<compile_context>
chip_gen: v6e
topology: v6e:2x2x1
jax: 0.10.0
libtpu: 0.0.40
codegen_flags: <defaults>
</compile_context>

<pallas_src>
import jax
import jax.numpy as jnp
from jax import lax
from jax.experimental import pallas as pl
from jax.experimental.pallas import tpu as pltpu


# ----------------------------- encoder kernel ------------------------------

def _encoder_kernel(w_ref, x_ref, b_ref, o_ref):
    # w: (Cenc, K) bf16, x: (K, tile_m) bf16, b: (Cenc, 1) f32
    acc = jnp.dot(w_ref[...], x_ref[...], preferred_element_type=jnp.float32)
    o_ref[...] = jnp.maximum(acc + b_ref[...], 0.0)


def encoder_matmul_t(w_t, x_t, b_col, tile_m=2048):
    """out (Cenc, M) = relu(w_t @ x_t + b_col); lane-dense output."""
    c_enc, k = w_t.shape
    k2, m = x_t.shape
    assert k == k2
    tile_m = m if m <= tile_m else tile_m
    # TODO(synk): for M not divisible by the tile, switch to pl.cdiv + masking.
    assert m % tile_m == 0, (m, tile_m)
    return pl.pallas_call(
        _encoder_kernel,
        out_shape=jax.ShapeDtypeStruct((c_enc, m), jnp.float32),
        grid=(m // tile_m,),
        in_specs=[
            pl.BlockSpec((c_enc, k), lambda i: (0, 0)),   # weights resident
            pl.BlockSpec((k, tile_m), lambda i: (0, i)),
            pl.BlockSpec((c_enc, 1), lambda i: (0, 0)),
        ],
        out_specs=pl.BlockSpec((c_enc, tile_m), lambda i: (0, i)),
        compiler_params=pltpu.CompilerParams(
            dimension_semantics=("parallel",)),
    )(w_t, x_t, b_col)


# ------------------------- fused predictor rollout -------------------------

def _rollout_kernel(s0_ref, a_ref, ws_ref, wa_ref, b_ref, out_ref, state_ref):
    t = pl.program_id(0)

    @pl.when(t == 0)
    def _():
        state_ref[...] = s0_ref[...]          # seed recurrence with s_x

    s = state_ref[...]                        # (B, D) f32, VMEM-resident carry
    # MXU: bf16 operands, f32 accumulation.
    acc = jnp.dot(s.astype(jnp.bfloat16), ws_ref[...],
                  preferred_element_type=jnp.float32)
    # VPU rank-A update (A is tiny; keeps the MXU slot free).
    a = a_ref[0]                              # (B, A) f32
    n_act = a.shape[1]
    for idx in range(n_act):
        acc = acc + a[:, idx:idx + 1] * wa_ref[idx:idx + 1, :]
    new_s = jnp.maximum(acc + b_ref[...], 0.0)
    state_ref[...] = new_s                    # carry to next grid step
    out_ref[0] = new_s                        # (1, B, D) output block at step t


def predictor_rollout(s0, actions_t, ws, wa, b):
    """Runs the whole serial rollout in a single pallas_call.

    s0        : (B, D) f32
    actions_t : (T-1, B, A) f32
    ws        : (D, D) bf16 (resident in VMEM across all steps)
    wa        : (A, D) f32
    b         : (1, D) f32
    returns   : (T-1, B, D) f32
    """
    t_m1, batch, a_dim = actions_t.shape
    d = s0.shape[1]
    return pl.pallas_call(
        _rollout_kernel,
        out_shape=jax.ShapeDtypeStruct((t_m1, batch, d), jnp.float32),
        grid=(t_m1,),
        in_specs=[
            pl.BlockSpec((batch, d), lambda t: (0, 0)),        # s0 (resident)
            pl.BlockSpec((1, batch, a_dim), lambda t: (t, 0, 0)),
            pl.BlockSpec((d, d), lambda t: (0, 0)),            # w_s (resident)
            pl.BlockSpec((a_dim, d), lambda t: (0, 0)),        # w_a (resident)
            pl.BlockSpec((1, d), lambda t: (0, 0)),            # bias (resident)
        ],
        out_specs=pl.BlockSpec((1, batch, d), lambda t: (t, 0, 0)),
        scratch_shapes=[pltpu.VMEM((batch, d), jnp.float32)],  # recurrent state
        compiler_params=pltpu.CompilerParams(
            dimension_semantics=("arbitrary",)),               # serial carry
    )(s0, actions_t, ws, wa, b)


# ------------------------------- JEPA glue ---------------------------------

def init_jepa_params(key, c_in=4, c_enc=8, hp=8, wp=8, action_dim=2):
    """Deterministic parameter init (shapes implied by the module's forward)."""
    k1, k2, k3, k4, k5 = jax.random.split(key, 5)
    kk = c_in * 3 * 3
    d = c_enc * hp * wp
    return {
        # encoder conv weights, transposed im2col layout (Cenc, C_in*kh*kw), bf16
        "w_enc_t": (jax.random.normal(k1, (c_enc, kk), jnp.float32)
                    * 0.1).astype(jnp.bfloat16),
        "b_enc_col": jax.random.normal(k2, (c_enc, 1), jnp.float32) * 0.1,
        # predictor: relu(s @ Ws + a @ Wa + b)
        "w_s": (jax.random.normal(k3, (d, d), jnp.float32)
                * 0.02).astype(jnp.bfloat16),
        "w_a": jax.random.normal(k4, (action_dim, d), jnp.float32) * 0.1,
        "b_pred": jax.random.normal(k5, (1, d), jnp.float32) * 0.1,
    }


def jepa_forward(params, states, actions, train=False):
    """
    states : (B, T, C, H, W)   float32  (NCHW per frame, like PyTorch)
    actions: (B, T-1, A)       float32
    returns: (B, T, C_enc*H'*W') flattened representations (train=False),
             or (s_x, s_y, s_pred) when train=True.
    """
    B, T, C, H, W = states.shape

    # ---- encoder: 3x3 stride-2 pad-1 conv via im2col + Pallas matmul+ReLU ----
    # TODO(synk): im2col + transpose left to XLA; could be fused into the
    # Pallas kernel with memory_space=pl.ANY sliced loads to avoid the
    # patches materialization.
    x = states.reshape(B * T, C, H, W)
    patches = lax.conv_general_dilated_patches(
        x, filter_shape=(3, 3), window_strides=(2, 2),
        padding=((1, 1), (1, 1)))                     # (B*T, C*9, H', W')
    BT, K, Hp, Wp = patches.shape
    M = BT * Hp * Wp
    # (K, M) layout so the kernel output (Cenc, M) is lane-dense.
    pat_km = patches.transpose(1, 0, 2, 3).reshape(K, M).astype(jnp.bfloat16)
    enc_cm = encoder_matmul_t(params["w_enc_t"], pat_km,
                              params["b_enc_col"])    # (Cenc, M) f32
    Cenc = enc_cm.shape[0]
    encoded_obs = enc_cm.reshape(Cenc, B, T, Hp, Wp).transpose(1, 2, 0, 3, 4)
    # (B, T, Cenc, Hp, Wp)  -- NCHW per frame

    s_x = encoded_obs[:, 0]        # (B, Cenc, H', W')
    s_y = encoded_obs[:, 1:]       # (B, T-1, Cenc, H', W')

    D = Cenc * Hp * Wp
    s0 = s_x.reshape(B, D)         # channel-first flatten (matches .view(B,-1))

    # ---- predictor rollout: single fused Pallas call over all T-1 steps ----
    Tm1 = actions.shape[1]
    actions_t = jnp.transpose(actions, (1, 0, 2))     # (T-1, B, A)
    s_pred_tbd = predictor_rollout(s0, actions_t, params["w_s"],
                                   params["w_a"], params["b_pred"])
    s_pred_flat = jnp.transpose(s_pred_tbd, (1, 0, 2))        # (B, T-1, D)
    s_pred = s_pred_flat.reshape(B, Tm1, Cenc, Hp, Wp)

    if train:
        return s_x, s_y, s_pred

    flattened_representations = jnp.concatenate(
        [s0[:, None, :], s_pred_flat], axis=1)                # (B, T, D)
    return flattened_representations


# --------------------------------- main -------------------------------------

if __name__ == "__main__":
    key = jax.random.PRNGKey(0)
    k_states, k_actions, k_params = jax.random.split(key, 3)

    B, T, C, H, W = 2, 4, 4, 16, 16
    A = 2
    Cenc, Hp, Wp = 8, H // 2, W // 2   # encoder stride 2

    states = jax.random.normal(k_states, (B, T, C, H, W), jnp.float32)
    actions = jax.random.normal(k_actions, (B, T - 1, A), jnp.float32)
    params = init_jepa_params(k_params, c_in=C, c_enc=Cenc,
                              hp=Hp, wp=Wp, action_dim=A)

    fwd = jax.jit(jepa_forward, static_argnames=("train",))
    reps = jax.block_until_ready(fwd(params, states, actions, train=False))

    assert reps.shape == (B, T, Cenc * Hp * Wp), reps.shape
    assert reps.dtype == jnp.float32

    print("KERNEL_OK")
</pallas_src>

<mosaic_0001>
module attributes {stable_mosaic.version = 11 : i64} {
  func.func @_encoder_kernel(%arg0: i32, %arg1: memref<8x36xbf16, #tpu.memory_space<vmem>>, %arg2: memref<36x512xbf16, #tpu.memory_space<vmem>>, %arg3: memref<8x1xf32, #tpu.memory_space<vmem>>, %arg4: memref<8x512xf32, #tpu.memory_space<vmem>>) attributes {dimension_semantics = [#tpu.dimension_semantics<parallel>], iteration_bounds = array<i64: 1>, scalar_prefetch = 0 : i64, scratch_operands = 0 : i64, tpu.core_type = #tpu.core_type<tc>, window_params = [{pipeline_mode = #tpu.pipeline_mode<synchronous>, transform_indices = @transform_0, window_bounds = array<i64: 8, 36>}, {transform_indices = @transform_1, window_bounds = array<i64: 36, 512>}, {pipeline_mode = #tpu.pipeline_mode<synchronous>, transform_indices = @transform_2, window_bounds = array<i64: 8, 1>}, {transform_indices = @transform_3, window_bounds = array<i64: 8, 512>}]} {
    %c0 = arith.constant 0 : index
    %c0_0 = arith.constant 0 : index
    %0 = vector.load %arg1[%c0, %c0_0] : memref<8x36xbf16, #tpu.memory_space<vmem>>, vector<8x36xbf16>
    %c0_1 = arith.constant 0 : index
    %c0_2 = arith.constant 0 : index
    %1 = vector.load %arg2[%c0_1, %c0_2] : memref<36x512xbf16, #tpu.memory_space<vmem>>, vector<36x512xbf16>
    %cst = arith.constant dense<0.000000e+00> : vector<8x512xf32>
    %2 = tpu.matmul %0, %1, %cst {dimension_numbers = #tpu.dot_dimension_numbers<[1], [0], [0], [1], [0, 0, 1, 1], [], []>} : vector<8x36xbf16>, vector<36x512xbf16>, vector<8x512xf32> -> vector<8x512xf32>
    %c0_3 = arith.constant 0 : index
    %c0_4 = arith.constant 0 : index
    %3 = vector.load %arg3[%c0_3, %c0_4] : memref<8x1xf32, #tpu.memory_space<vmem>>, vector<8x1xf32>
    %4 = vector.broadcast %3 : vector<8x1xf32> to vector<8x512xf32>
    %5 = arith.addf %2, %4 : vector<8x512xf32>
    %cst_5 = arith.constant 0.000000e+00 : f32
    %6 = vector.broadcast %cst_5 : f32 to vector<8x512xf32>
    %7 = arith.maximumf %5, %6 : vector<8x512xf32>
    %c0_6 = arith.constant 0 : index
    %c0_7 = arith.constant 0 : index
    %8 = vector.load %arg4[%c0_6, %c0_7] : memref<8x512xf32, #tpu.memory_space<vmem>>, vector<8x512xf32>
    tpu.vector_store %arg4[%c0_6, %c0_7], %7 {strides = array<i32>} : memref<8x512xf32, #tpu.memory_space<vmem>>, vector<8x512xf32>,
    return
  }
  func.func @transform_0(%arg0: i32) -> (i32, i32) {
    %c0_i32 = arith.constant 0 : i32
    %c0_i32_0 = arith.constant 0 : i32
    %c0_i32_1 = arith.constant 0 : i32
    return %c0_i32, %c0_i32_0 : i32, i32
  }
  func.func @transform_1(%arg0: i32) -> (i32, i32) {
    %c0_i32 = arith.constant 0 : i32
    %c0_i32_0 = arith.constant 0 : i32
    return %c0_i32, %arg0 : i32, i32
  }
  func.func @transform_2(%arg0: i32) -> (i32, i32) {
    %c0_i32 = arith.constant 0 : i32
    %c0_i32_0 = arith.constant 0 : i32
    %c0_i32_1 = arith.constant 0 : i32
    return %c0_i32, %c0_i32_0 : i32, i32
  }
  func.func @transform_3(%arg0: i32) -> (i32, i32) {
    %c0_i32 = arith.constant 0 : i32
    %c0_i32_0 = arith.constant 0 : i32
    return %c0_i32, %arg0 : i32, i32
  }
}

module attributes {stable_mosaic.version = 11 : i64} {
  func.func @_rollout_kernel(%arg0: i32, %arg1: memref<2x512xf32, #tpu.memory_space<vmem>>, %arg2: memref<1x2x2xf32, #tpu.memory_space<vmem>>, %arg3: memref<512x512xbf16, #tpu.memory_space<vmem>>, %arg4: memref<2x512xf32, #tpu.memory_space<vmem>>, %arg5: memref<1x512xf32, #tpu.memory_space<vmem>>, %arg6: memref<1x2x512xf32, #tpu.memory_space<vmem>>, %arg7: memref<2x512xf32, #tpu.memory_space<vmem>>) attributes {dimension_semantics = [#tpu.dimension_semantics<arbitrary>], iteration_bounds = array<i64: 3>, scalar_prefetch = 0 : i64, scratch_operands = 1 : i64, tpu.core_type = #tpu.core_type<tc>, window_params = [{pipeline_mode = #tpu.pipeline_mode<synchronous>, transform_indices = @transform_0, window_bounds = array<i64: 2, 512>}, {transform_indices = @transform_1, window_bounds = array<i64: 1, 2, 2>}, {pipeline_mode = #tpu.pipeline_mode<synchronous>, transform_indices = @transform_2, window_bounds = array<i64: 512, 512>}, {pipeline_mode = #tpu.pipeline_mode<synchronous>, transform_indices = @transform_3, window_bounds = array<i64: 2, 512>}, {pipeline_mode = #tpu.pipeline_mode<synchronous>, transform_indices = @transform_4, window_bounds = array<i64: 1, 512>}, {transform_indices = @transform_5, window_bounds = array<i64: 1, 2, 512>}]} {
    %c0_i32 = arith.constant 0 : i32
    %0 = arith.cmpi eq, %arg0, %c0_i32 : i32
    %1 = arith.extui %0 : i1 to i32
    %c0_i32_0 = arith.constant 0 : i32
    %2 = arith.cmpi ne, %1, %c0_i32_0 : i32
    scf.if %2 {
      %c0_18 = arith.constant 0 : index
      %c0_19 = arith.constant 0 : index
      %30 = vector.load %arg1[%c0_18, %c0_19] : memref<2x512xf32, #tpu.memory_space<vmem>>, vector<2x512xf32>
      %c0_20 = arith.constant 0 : index
      %c0_21 = arith.constant 0 : index
      %31 = vector.load %arg7[%c0_20, %c0_21] : memref<2x512xf32, #tpu.memory_space<vmem>>, vector<2x512xf32>
      tpu.vector_store %arg7[%c0_20, %c0_21], %30 {strides = array<i32>} : memref<2x512xf32, #tpu.memory_space<vmem>>, vector<2x512xf32>,
    } else {
    }
    %c0 = arith.constant 0 : index
    %c0_1 = arith.constant 0 : index
    %3 = vector.load %arg7[%c0, %c0_1] : memref<2x512xf32, #tpu.memory_space<vmem>>, vector<2x512xf32>
    %4 = arith.truncf %3 : vector<2x512xf32> to vector<2x512xbf16>
    %c0_2 = arith.constant 0 : index
    %c0_3 = arith.constant 0 : index
    %5 = vector.load %arg3[%c0_2, %c0_3] : memref<512x512xbf16, #tpu.memory_space<vmem>>, vector<512x512xbf16>
    %cst = arith.constant dense<0.000000e+00> : vector<2x512xf32>
    %6 = tpu.matmul %4, %5, %cst {dimension_numbers = #tpu.dot_dimension_numbers<[1], [0], [0], [1], [0, 0, 1, 1], [], []>} : vector<2x512xbf16>, vector<512x512xbf16>, vector<2x512xf32> -> vector<2x512xf32>
    %c0_4 = arith.constant 0 : index
    %c0_5 = arith.constant 0 : index
    %c0_6 = arith.constant 0 : index
    %7 = vector.load %arg2[%c0_4, %c0_5, %c0_6] : memref<1x2x2xf32, #tpu.memory_space<vmem>>, vector<1x2x2xf32>
    %8 = vector.shape_cast %7 : vector<1x2x2xf32> to vector<2x2xf32>
    %9 = vector.extract_strided_slice %8 {offsets = [0, 0], sizes = [2, 1], strides = [1, 1]} : vector<2x2xf32> to vector<2x1xf32>
    %c0_7 = arith.constant 0 : index
    %c0_8 = arith.constant 0 : index
    %10 = vector.load %arg4[%c0_7, %c0_8] : memref<2x512xf32, #tpu.memory_space<vmem>>, vector<1x512xf32>
    %11 = vector.broadcast %9 : vector<2x1xf32> to vector<2x512xf32>
    %12 = vector.broadcast %10 : vector<1x512xf32> to vector<2x512xf32>
    %13 = arith.mulf %11, %12 : vector<2x512xf32>
    %14 = arith.addf %6, %13 : vector<2x512xf32>
    %15 = vector.extract_strided_slice %8 {offsets = [0, 1], sizes = [2, 1], strides = [1, 1]} : vector<2x2xf32> to vector<2x1xf32>
    %c1 = arith.constant 1 : index
    %c0_9 = arith.constant 0 : index
    %16 = vector.load %arg4[%c1, %c0_9] : memref<2x512xf32, #tpu.memory_space<vmem>>, vector<1x512xf32>
    %17 = vector.broadcast %15 : vector<2x1xf32> to vector<2x512xf32>
    %18 = vector.broadcast %16 : vector<1x512xf32> to vector<2x512xf32>
    %19 = arith.mulf %17, %18 : vector<2x512xf32>
    %20 = arith.addf %14, %19 : vector<2x512xf32>
    %c0_10 = arith.constant 0 : index
    %c0_11 = arith.constant 0 : index
    %21 = vector.load %arg5[%c0_10, %c0_11] : memref<1x512xf32, #tpu.memory_space<vmem>>, vector<1x512xf32>
    %22 = vector.broadcast %21 : vector<1x512xf32> to vector<2x512xf32>
    %23 = arith.addf %20, %22 : vector<2x512xf32>
    %cst_12 = arith.constant 0.000000e+00 : f32
    %24 = vector.broadcast %cst_12 : f32 to vector<2x512xf32>
    %25 = arith.maximumf %23, %24 : vector<2x512xf32>
    %c0_13 = arith.constant 0 : index
    %c0_14 = arith.constant 0 : index
    %26 = vector.load %arg7[%c0_13, %c0_14] : memref<2x512xf32, #tpu.memory_space<vmem>>, vector<2x512xf32>
    tpu.vector_store %arg7[%c0_13, %c0_14], %25 {strides = array<i32>} : memref<2x512xf32, #tpu.memory_space<vmem>>, vector<2x512xf32>,
    %c0_15 = arith.constant 0 : index
    %c0_16 = arith.constant 0 : index
    %c0_17 = arith.constant 0 : index
    %27 = vector.load %arg6[%c0_15, %c0_16, %c0_17] : memref<1x2x512xf32, #tpu.memory_space<vmem>>, vector<1x2x512xf32>
    %28 = vector.shape_cast %27 : vector<1x2x512xf32> to vector<2x512xf32>
    %29 = vector.shape_cast %25 : vector<2x512xf32> to vector<1x2x512xf32>
    tpu.vector_store %arg6[%c0_15, %c0_16, %c0_17], %29 {strides = array<i32>} : memref<1x2x512xf32, #tpu.memory_space<vmem>>, vector<1x2x512xf32>,
    return
  }
  func.func @transform_0(%arg0: i32) -> (i32, i32) {
    %c0_i32 = arith.constant 0 : i32
    %c0_i32_0 = arith.constant 0 : i32
    %c0_i32_1 = arith.constant 0 : i32
    return %c0_i32, %c0_i32_0 : i32, i32
  }
  func.func @transform_1(%arg0: i32) -> (i32, i32, i32) {
    %c0_i32 = arith.constant 0 : i32
    %c0_i32_0 = arith.constant 0 : i32
    %c0_i32_1 = arith.constant 0 : i32
    return %arg0, %c0_i32, %c0_i32_0 : i32, i32, i32
  }
  func.func @transform_2(%arg0: i32) -> (i32, i32) {
    %c0_i32 = arith.constant 0 : i32
    %c0_i32_0 = arith.constant 0 : i32
    %c0_i32_1 = arith.constant 0 : i32
    return %c0_i32, %c0_i32_0 : i32, i32
  }
  func.func @transform_3(%arg0: i32) -> (i32, i32) {
    %c0_i32 = arith.constant 0 : i32
    %c0_i32_0 = arith.constant 0 : i32
    %c0_i32_1 = arith.constant 0 : i32
    return %c0_i32, %c0_i32_0 : i32, i32
  }
  func.func @transform_4(%arg0: i32) -> (i32, i32) {
    %c0_i32 = arith.constant 0 : i32
    %c0_i32_0 = arith.constant 0 : i32
    %c0_i32_1 = arith.constant 0 : i32
    return %c0_i32, %c0_i32_0 : i32, i32
  }
  func.func @transform_5(%arg0: i32) -> (i32, i32, i32) {
    %c0_i32 = arith.constant 0 : i32
    %c0_i32_0 = arith.constant 0 : i32
    %c0_i32_1 = arith.constant 0 : i32
    return %arg0, %c0_i32, %c0_i32_0 : i32, i32, i32
  }
}

</mosaic_0001>

<llo_original>
// kernel: squeeze.2
$region0: #{squeeze.2}
  %s0 = inlined_call_operand.vmem [shape: f32[2,1,8,8,8], index: 0, kind: input, shape index: {}]
  %s1 = inlined_call_operand.vmem [shape: f32[2,512], index: 1, kind: output, shape index: {}]
  $region1: #{squeeze.2} parent=0
    #allocation0 [shape = 'u8[16384]{0}', space=vmem, size = 0x4000, scoped, tag = 'scoped mem for output reshape']
    %s2 = smov 3
    %v3 = vld [vmem:[%s0] ss:$16 sm:%s2]
    %s4 = smov 12
    %v5 = vld [vmem:[%s0] ss:$16 sm:%s4]
    %vm6 = vcmask 1043458
    %v7 = vsel %vm6, %v5, %v3
    %s8 = smov 48
    %v9 = vld [vmem:[%s0] ss:$16 sm:%s8]
    %vm10 = vcmask 1045508
    %v11 = vsel %vm10, %v9, %v7
    %s12 = smov 192
    %v13 = vld [vmem:[%s0] ss:$16 sm:%s12]
    %vm14 = vcmask 1047558
    %v15 = vsel %vm14, %v13, %v11
    %vm16 = vcmask 64512
    %17 = vst.msk [vmem:[#allocation0] ss:$8 sm:$0xf] %vm16, %v15
    %s18 = scalar_lea.vmem [#allocation0], 4294967265
    %19 = vst.msk [vmem:[%s18] ss:$8 sm:$0xf0] %vm16, %v15
    %s20 = scalar_lea.vmem %s0, 15
    %v21 = vld [vmem:[%s20] sm:$0x1]
    %s22 = scalar_lea.vmem %s0, 127
    %s23 = smov 6
    %v24 = vld [vmem:[%s22] ss:$-48 sm:%s23]
    %vm25 = vcmask 1042433
    %v26 = vsel %vm25, %v24, %v21
    %s27 = scalar_lea.vmem %s0, 239
    %s28 = smov 24
    %v29 = vld [vmem:[%s27] ss:$-48 sm:%s28]
    %vm30 = vcmask 1044483
    %v31 = vsel %vm30, %v29, %v26
    %s32 = scalar_lea.vmem %s0, 351
    %s33 = smov 96
    %v34 = vld [vmem:[%s32] ss:$-48 sm:%s33]
    %vm35 = vcmask 1046533
    %v36 = vsel %vm35, %v34, %v31
    %s37 = scalar_lea.vmem %s0, 120
    %v38 = vld [vmem:[%s37] sm:$0x80]
    %vm39 = vcmask 1047559
    %v40 = vsel %vm39, %v38, %v36
    %41 = vrot.lane.b32.xlu0 %v40, 120
    %v42 = vpop.permute.xlu0 %41
    %vm43 = vcmask 1048512
    %44 = vst.msk [vmem:[#allocation0] sm:$0x3] %vm43, %v42
    %s45 = scalar_lea.vmem [#allocation0], 6
    %46 = vst.msk [vmem:[%s45] sm:$0xc] %vm43, %v42
    %s47 = scalar_lea.vmem [#allocation0], 12
    %48 = vst.msk [vmem:[%s47] sm:$0x30] %vm43, %v42
    %s49 = scalar_lea.vmem [#allocation0], 18
    %50 = vst.msk [vmem:[%s49] sm:$0xc0] %vm43, %v42
    %s51 = scalar_lea.vmem %s0, 14
    %v52 = vld [vmem:[%s51] sm:$0x1]
    %s53 = scalar_lea.vmem %s0, 126
    %s54 = smov 6
    %v55 = vld [vmem:[%s53] ss:$-48 sm:%s54]
    %vm56 = vcmask 1042433
    %v57 = vsel %vm56, %v55, %v52
    %s58 = scalar_lea.vmem %s0, 238
    %s59 = smov 24
    %v60 = vld [vmem:[%s58] ss:$-48 sm:%s59]
    %vm61 = vcmask 1044483
    %v62 = vsel %vm61, %v60, %v57
    %s63 = scalar_lea.vmem %s0, 350
    %s64 = smov 96
    %v65 = vld [vmem:[%s63] ss:$-48 sm:%s64]
    %vm66 = vcmask 1046533
    %v67 = vsel %vm66, %v65, %v62
    %s68 = scalar_lea.vmem %s0, 119
    %v69 = vld [vmem:[%s68] sm:$0x80]
    %vm70 = vcmask 1047559
    %v71 = vsel %vm70, %v69, %v67
    %72 = vrot.lane.b32.xlu0 %v71, 112
    %v73 = vpop.permute.xlu0 %72
    %vm74 = vcmask 982912
    %75 = vst.msk [vmem:[#allocation0] sm:$0x3] %vm74, %v73
    %s76 = scalar_lea.vmem [#allocation0], 6
    %77 = vst.msk [vmem:[%s76] sm:$0xc] %vm74, %v73
    %s78 = scalar_lea.vmem [#allocation0], 12
    %79 = vst.msk [vmem:[%s78] sm:$0x30] %vm74, %v73
    %s80 = scalar_lea.vmem [#allocation0], 18
    %81 = vst.msk [vmem:[%s80] sm:$0xc0] %vm74, %v73
    %s82 = scalar_lea.vmem %s0, 13
    %v83 = vld [vmem:[%s82] sm:$0x1]
    %s84 = scalar_lea.vmem %s0, 125
    %s85 = smov 6
    %v86 = vld [vmem:[%s84] ss:$-48 sm:%s85]
    %vm87 = vcmask 1042433
    %v88 = vsel %vm87, %v86, %v83
    %s89 = scalar_lea.vmem %s0, 237
    %s90 = smov 24
    %v91 = vld [vmem:[%s89] ss:$-48 sm:%s90]
    %vm92 = vcmask 1044483
    %v93 = vsel %vm92, %v91, %v88
    %s94 = scalar_lea.vmem %s0, 349
    %s95 = smov 96
    %v96 = vld [vmem:[%s94] ss:$-48 sm:%s95]
    %vm97 = vcmask 1046533
    %v98 = vsel %vm97, %v96, %v93
    %s99 = scalar_lea.vmem %s0, 118
    %v100 = vld [vmem:[%s99] sm:$0x80]
    %vm101 = vcmask 1047559
    %v102 = vsel %vm101, %v100, %v98
    %103 = vrot.lane.b32.xlu0 %v102, 104
    %v104 = vpop.permute.xlu0 %103
    %vm105 = vcmask 917312
    %106 = vst.msk [vmem:[#allocation0] sm:$0x3] %vm105, %v104
    %s107 = scalar_lea.vmem [#allocation0], 6
    %108 = vst.msk [vmem:[%s107] sm:$0xc] %vm105, %v104
    %s109 = scalar_lea.vmem [#allocation0], 12
    %110 = vst.msk [vmem:[%s109] sm:$0x30] %vm105, %v104
    %s111 = scalar_lea.vmem [#allocation0], 18
    %112 = vst.msk [vmem:[%s111] sm:$0xc0] %vm105, %v104
    %s113 = scalar_lea.vmem %s0, 12
    %v114 = vld [vmem:[%s113] sm:$0x1]
    %s115 = scalar_lea.vmem %s0, 124
    %s116 = smov 6
    %v117 = vld [vmem:[%s115] ss:$-48 sm:%s116]
    %vm118 = vcmask 1042433
    %v119 = vsel %vm118, %v117, %v114
    %s120 = scalar_lea.vmem %s0, 236
    %s121 = smov 24
    %v122 = vld [vmem:[%s120] ss:$-48 sm:%s121]
    %vm123 = vcmask 1044483
    %v124 = vsel %vm123, %v122, %v119
    %s125 = scalar_lea.vmem %s0, 348
    %s126 = smov 96
    %v127 = vld [vmem:[%s125] ss:$-48 sm:%s126]
    %vm128 = vcmask 1046533
    %v129 = vsel %vm128, %v127, %v124
    %s130 = scalar_lea.vmem %s0, 117
    %v131 = vld [vmem:[%s130] sm:$0x80]
    %vm132 = vcmask 1047559
    %v133 = vsel %vm132, %v131, %v129
    %134 = vrot.lane.b32.xlu0 %v133, 96
    %v135 = vpop.permute.xlu0 %134
    %vm136 = vcmask 851712
    %137 = vst.msk [vmem:[#allocation0] sm:$0x3] %vm136, %v135
    %s138 = scalar_lea.vmem [#allocation0], 6
    %139 = vst.msk [vmem:[%s138] sm:$0xc] %vm136, %v135
    %s140 = scalar_lea.vmem [#allocation0], 12
    %141 = vst.msk [vmem:[%s140] sm:$0x30] %vm136, %v135
    %s142 = scalar_lea.vmem [#allocation0], 18
    %143 = vst.msk [vmem:[%s142] sm:$0xc0] %vm136, %v135
    %s144 = scalar_lea.vmem %s0, 11
    %v145 = vld [vmem:[%s144] sm:$0x1]
    %s146 = scalar_lea.vmem %s0, 123
    %s147 = smov 6
    %v148 = vld [vmem:[%s146] ss:$-48 sm:%s147]
    %vm149 = vcmask 1042433
    %v150 = vsel %vm149, %v148, %v145
    %s151 = scalar_lea.vmem %s0, 235
    %s152 = smov 24
    %v153 = vld [vmem:[%s151] ss:$-48 sm:%s152]
    %vm154 = vcmask 1044483
    %v155 = vsel %vm154, %v153, %v150
    %s156 = scalar_lea.vmem %s0, 347
    %s157 = smov 96
    %v158 = vld [vmem:[%s156] ss:$-48 sm:%s157]
    %vm159 = vcmask 1046533
    %v160 = vsel %vm159, %v158, %v155
    %s161 = scalar_lea.vmem %s0, 116
    %v162 = vld [vmem:[%s161] sm:$0x80]
    %vm163 = vcmask 1047559
    %v164 = vsel %vm163, %v162, %v160
    %165 = vrot.lane.b32.xlu0 %v164, 88
    %v166 = vpop.permute.xlu0 %165
    %vm167 = vcmask 786112
    %168 = vst.msk [vmem:[#allocation0] sm:$0x3] %vm167, %v166
    %s169 = scalar_lea.vmem [#allocation0], 6
    %170 = vst.msk [vmem:[%s169] sm:$0xc] %vm167, %v166
    %s171 = scalar_lea.vmem [#allocation0], 12
    %172 = vst.msk [vmem:[%s171] sm:$0x30] %vm167, %v166
    %s173 = scalar_lea.vmem [#allocation0], 18
    %174 = vst.msk [vmem:[%s173] sm:$0xc0] %vm167, %v166
    %s175 = scalar_lea.vmem %s0, 10
    %v176 = vld [vmem:[%s175] sm:$0x1]
    %s177 = scalar_lea.vmem %s0, 122
    %s178 = smov 6
    %v179 = vld [vmem:[%s177] ss:$-48 sm:%s178]
    %vm180 = vcmask 1042433
    %v181 = vsel %vm180, %v179, %v176
    %s182 = scalar_lea.vmem %s0, 234
    %s183 = smov 24
    %v184 = vld [vmem:[%s182] ss:$-48 sm:%s183]
    %vm185 = vcmask 1044483
    %v186 = vsel %vm185, %v184, %v181
    %s187 = scalar_lea.vmem %s0, 346
    %s188 = smov 96
    %v189 = vld [vmem:[%s187] ss:$-48 sm:%s188]
    %vm190 = vcmask 1046533
    %v191 = vsel %vm190, %v189, %v186
    %s192 = scalar_lea.vmem %s0, 115
    %v193 = vld [vmem:[%s192] sm:$0x80]
    %vm194 = vcmask 1047559
    %v195 = vsel %vm194, %v193, %v191
    %196 = vrot.lane.b32.xlu0 %v195, 80
    %v197 = vpop.permute.xlu0 %196
    %vm198 = vcmask 720512
    %199 = vst.msk [vmem:[#allocation0] sm:$0x3] %vm198, %v197
    %s200 = scalar_lea.vmem [#allocation0], 6
    %201 = vst.msk [vmem:[%s200] sm:$0xc] %vm198, %v197
    %s202 = scalar_lea.vmem [#allocation0], 12
    %203 = vst.msk [vmem:[%s202] sm:$0x30] %vm198, %v197
    %s204 = scalar_lea.vmem [#allocation0], 18
    %205 = vst.msk [vmem:[%s204] sm:$0xc0] %vm198, %v197
    %s206 = scalar_lea.vmem %s0, 9
    %v207 = vld [vmem:[%s206] sm:$0x1]
    %s208 = scalar_lea.vmem %s0, 121
    %s209 = smov 6
    %v210 = vld [vmem:[%s208] ss:$-48 sm:%s209]
    %vm211 = vcmask 1042433
    %v212 = vsel %vm211, %v210, %v207
    %s213 = scalar_lea.vmem %s0, 233
    %s214 = smov 24
    %v215 = vld [vmem:[%s213] ss:$-48 sm:%s214]
    %vm216 = vcmask 1044483
    %v217 = vsel %vm216, %v215, %v212
    %s218 = scalar_lea.vmem %s0, 345
    %s219 = smov 96
    %v220 = vld [vmem:[%s218] ss:$-48 sm:%s219]
    %vm221 = vcmask 1046533
    %v222 = vsel %vm221, %v220, %v217
    %s223 = scalar_lea.vmem %s0, 114
    %v224 = vld [vmem:[%s223] sm:$0x80]
    %vm225 = vcmask 1047559
    %v226 = vsel %vm225, %v224, %v222
    %227 = vrot.lane.b32.xlu0 %v226, 72
    %v228 = vpop.permute.xlu0 %227
    %vm229 = vcmask 654912
    %230 = vst.msk [vmem:[#allocation0] sm:$0x3] %vm229, %v228
    %s231 = scalar_lea.vmem [#allocation0], 6
    %232 = vst.msk [vmem:[%s231] sm:$0xc] %vm229, %v228
    %s233 = scalar_lea.vmem [#allocation0], 12
    %234 = vst.msk [vmem:[%s233] sm:$0x30] %vm229, %v228
    %s235 = scalar_lea.vmem [#allocation0], 18
    %236 = vst.msk [vmem:[%s235] sm:$0xc0] %vm229, %v228
    %s237 = scalar_lea.vmem %s0, 8
    %v238 = vld [vmem:[%s237] sm:$0x1]
    %s239 = scalar_lea.vmem %s0, 120
    %s240 = smov 6
    %v241 = vld [vmem:[%s239] ss:$-48 sm:%s240]
    %vm242 = vcmask 1042433
    %v243 = vsel %vm242, %v241, %v238
    %s244 = scalar_lea.vmem %s0, 232
    %s245 = smov 24
    %v246 = vld [vmem:[%s244] ss:$-48 sm:%s245]
    %vm247 = vcmask 1044483
    %v248 = vsel %vm247, %v246, %v243
    %s249 = scalar_lea.vmem %s0, 344
    %s250 = smov 96
    %v251 = vld [vmem:[%s249] ss:$-48 sm:%s250]
    %vm252 = vcmask 1046533
    %v253 = vsel %vm252, %v251, %v248
    %s254 = scalar_lea.vmem %s0, 113
    %v255 = vld [vmem:[%s254] sm:$0x80]
    %vm256 = vcmask 1047559
    %v257 = vsel %vm256, %v255, %v253
    %258 = vrot.lane.b32.xlu0 %v257, 64
    %v259 = vpop.permute.xlu0 %258
    %vm260 = vcmask 589312
    %261 = vst.msk [vmem:[#allocation0] sm:$0x3] %vm260, %v259
    %s262 = scalar_lea.vmem [#allocation0], 6
    %263 = vst.msk [vmem:[%s262] sm:$0xc] %vm260, %v259
    %s264 = scalar_lea.vmem [#allocation0], 12
    %265 = vst.msk [vmem:[%s264] sm:$0x30] %vm260, %v259
    %s266 = scalar_lea.vmem [#allocation0], 18
    %267 = vst.msk [vmem:[%s266] sm:$0xc0] %vm260, %v259
    %s268 = scalar_lea.vmem %s0, 7
    %v269 = vld [vmem:[%s268] sm:$0x1]
    %s270 = scalar_lea.vmem %s0, 119
    %s271 = smov 6
    %v272 = vld [vmem:[%s270] ss:$-48 sm:%s271]
    %vm273 = vcmask 1042433
    %v274 = vsel %vm273, %v272, %v269
    %s275 = scalar_lea.vmem %s0, 231
    %s276 = smov 24
    %v277 = vld [vmem:[%s275] ss:$-48 sm:%s276]
    %vm278 = vcmask 1044483
    %v279 = vsel %vm278, %v277, %v274
    %s280 = scalar_lea.vmem %s0, 343
    %s281 = smov 96
    %v282 = vld [vmem:[%s280] ss:$-48 sm:%s281]
    %vm283 = vcmask 1046533
    %v284 = vsel %vm283, %v282, %v279
    %s285 = scalar_lea.vmem %s0, 112
    %v286 = vld [vmem:[%s285] sm:$0x80]
    %vm287 = vcmask 1047559
    %v288 = vsel %vm287, %v286, %v284
    %289 = vrot.lane.b32.xlu0 %v288, 56
    %v290 = vpop.permute.xlu0 %289
    %vm291 = vcmask 523712
    %292 = vst.msk [vmem:[#allocation0] sm:$0x3] %vm291, %v290
    %s293 = scalar_lea.vmem [#allocation0], 6
    %294 = vst.msk [vmem:[%s293] sm:$0xc] %vm291, %v290
    %s295 = scalar_lea.vmem [#allocation0], 12
    %296 = vst.msk [vmem:[%s295] sm:$0x30] %vm291, %v290
    %s297 = scalar_lea.vmem [#allocation0], 18
    %298 = vst.msk [vmem:[%s297] sm:$0xc0] %vm291, %v290
    %s299 = scalar_lea.vmem %s0, 6
    %v300 = vld [vmem:[%s299] sm:$0x1]
    %s301 = scalar_lea.vmem %s0, 118
    %s302 = smov 6
    %v303 = vld [vmem:[%s301] ss:$-48 sm:%s302]
    %vm304 = vcmask 1042433
    %v305 = vsel %vm304, %v303, %v300
    %s306 = scalar_lea.vmem %s0, 230
    %s307 = smov 24
    %v308 = vld [vmem:[%s306] ss:$-48 sm:%s307]
    %vm309 = vcmask 1044483
    %v310 = vsel %vm309, %v308, %v305
    %s311 = scalar_lea.vmem %s0, 342
    %s312 = smov 96
    %v313 = vld [vmem:[%s311] ss:$-48 sm:%s312]
    %vm314 = vcmask 1046533
    %v315 = vsel %vm314, %v313, %v310
    %s316 = scalar_lea.vmem %s0, 111
    %v317 = vld [vmem:[%s316] sm:$0x80]
    %vm318 = vcmask 1047559
    %v319 = vsel %vm318, %v317, %v315
    %320 = vrot.lane.b32.xlu0 %v319, 48
    %v321 = vpop.permute.xlu0 %320
    %vm322 = vcmask 458112
    %323 = vst.msk [vmem:[#allocation0] sm:$0x3] %vm322, %v321
    %s324 = scalar_lea.vmem [#allocation0], 6
    %325 = vst.msk [vmem:[%s324] sm:$0xc] %vm322, %v321
    %s326 = scalar_lea.vmem [#allocation0], 12
    %327 = vst.msk [vmem:[%s326] sm:$0x30] %vm322, %v321
    %s328 = scalar_lea.vmem [#allocation0], 18
    %329 = vst.msk [vmem:[%s328] sm:$0xc0] %vm322, %v321
    %s330 = scalar_lea.vmem %s0, 5
    %v331 = vld [vmem:[%s330] sm:$0x1]
    %s332 = scalar_lea.vmem %s0, 117
    %s333 = smov 6
    %v334 = vld [vmem:[%s332] ss:$-48 sm:%s333]
    %vm335 = vcmask 1042433
    %v336 = vsel %vm335, %v334, %v331
    %s337 = scalar_lea.vmem %s0, 229
    %s338 = smov 24
    %v339 = vld [vmem:[%s337] ss:$-48 sm:%s338]
    %vm340 = vcmask 1044483
    %v341 = vsel %vm340, %v339, %v336
    %s342 = scalar_lea.vmem %s0, 341
    %s343 = smov 96
    %v344 = vld [vmem:[%s342] ss:$-48 sm:%s343]
    %vm345 = vcmask 1046533
    %v346 = vsel %vm345, %v344, %v341
    %s347 = scalar_lea.vmem %s0, 110
    %v348 = vld [vmem:[%s347] sm:$0x80]
    %vm349 = vcmask 1047559
    %v350 = vsel %vm349, %v348, %v346
    %351 = vrot.lane.b32.xlu0 %v350, 40
    %v352 = vpop.permute.xlu0 %351
    %vm353 = vcmask 392512
    %354 = vst.msk [vmem:[#allocation0] sm:$0x3] %vm353, %v352
    %s355 = scalar_lea.vmem [#allocation0], 6
    %356 = vst.msk [vmem:[%s355] sm:$0xc] %vm353, %v352
    %s357 = scalar_lea.vmem [#allocation0], 12
    %358 = vst.msk [vmem:[%s357] sm:$0x30] %vm353, %v352
    %s359 = scalar_lea.vmem [#allocation0], 18
    %360 = vst.msk [vmem:[%s359] sm:$0xc0] %vm353, %v352
    %s361 = scalar_lea.vmem %s0, 4
    %v362 = vld [vmem:[%s361] sm:$0x1]
    %s363 = scalar_lea.vmem %s0, 116
    %s364 = smov 6
    %v365 = vld [vmem:[%s363] ss:$-48 sm:%s364]
    %vm366 = vcmask 1042433
    %v367 = vsel %vm366, %v365, %v362
    %s368 = scalar_lea.vmem %s0, 228
    %s369 = smov 24
    %v370 = vld [vmem:[%s368] ss:$-48 sm:%s369]
    %vm371 = vcmask 1044483
    %v372 = vsel %vm371, %v370, %v367
    %s373 = scalar_lea.vmem %s0, 340
    %s374 = smov 96
    %v375 = vld [vmem:[%s373] ss:$-48 sm:%s374]
    %vm376 = vcmask 1046533
    %v377 = vsel %vm376, %v375, %v372
    %s378 = scalar_lea.vmem %s0, 109
    %v379 = vld [vmem:[%s378] sm:$0x80]
    %vm380 = vcmask 1047559
    %v381 = vsel %vm380, %v379, %v377
    %382 = vrot.lane.b32.xlu0 %v381, 32
    %v383 = vpop.permute.xlu0 %382
    %vm384 = vcmask 326912
    %385 = vst.msk [vmem:[#allocation0] sm:$0x3] %vm384, %v383
    %s386 = scalar_lea.vmem [#allocation0], 6
    %387 = vst.msk [vmem:[%s386] sm:$0xc] %vm384, %v383
    %s388 = scalar_lea.vmem [#allocation0], 12
    %389 = vst.msk [vmem:[%s388] sm:$0x30] %vm384, %v383
    %s390 = scalar_lea.vmem [#allocation0], 18
    %391 = vst.msk [vmem:[%s390] sm:$0xc0] %vm384, %v383
    %s392 = scalar_lea.vmem %s0, 3
    %v393 = vld [vmem:[%s392] sm:$0x1]
    %s394 = scalar_lea.vmem %s0, 115
    %s395 = smov 6
    %v396 = vld [vmem:[%s394] ss:$-48 sm:%s395]
    %vm397 = vcmask 1042433
    %v398 = vsel %vm397, %v396, %v393
    %s399 = scalar_lea.vmem %s0, 227
    %s400 = smov 24
    %v401 = vld [vmem:[%s399] ss:$-48 sm:%s400]
    %vm402 = vcmask 1044483
    %v403 = vsel %vm402, %v401, %v398
    %s404 = scalar_lea.vmem %s0, 339
    %s405 = smov 96
    %v406 = vld [vmem:[%s404] ss:$-48 sm:%s405]
    %vm407 = vcmask 1046533
    %v408 = vsel %vm407, %v406, %v403
    %s409 = scalar_lea.vmem %s0, 108
    %v410 = vld [vmem:[%s409] sm:$0x80]
    %vm411 = vcmask 1047559
    %v412 = vsel %vm411, %v410, %v408
    %413 = vrot.lane.b32.xlu0 %v412, 24
    %v414 = vpop.permute.xlu0 %413
    %vm415 = vcmask 261312
    %416 = vst.msk [vmem:[#allocation0] sm:$0x3] %vm415, %v414
    %s417 = scalar_lea.vmem [#allocation0], 6
    %418 = vst.msk [vmem:[%s417] sm:$0xc] %vm415, %v414
    %s419 = scalar_lea.vmem [#allocation0], 12
    %420 = vst.msk [vmem:[%s419] sm:$0x30] %vm415, %v414
    %s421 = scalar_lea.vmem [#allocation0], 18
    %422 = vst.msk [vmem:[%s421] sm:$0xc0] %vm415, %v414
    %s423 = scalar_lea.vmem %s0, 2
    %v424 = vld [vmem:[%s423] sm:$0x1]
    %s425 = scalar_lea.vmem %s0, 114
    %s426 = smov 6
    %v427 = vld [vmem:[%s425] ss:$-48 sm:%s426]
    %vm428 = vcmask 1042433
    %v429 = vsel %vm428, %v427, %v424
    %s430 = scalar_lea.vmem %s0, 226
    %s431 = smov 24
    %v432 = vld [vmem:[%s430] ss:$-48 sm:%s431]
    %vm433 = vcmask 1044483
    %v434 = vsel %vm433, %v432, %v429
    %s435 = scalar_lea.vmem %s0, 338
    %s436 = smov 96
    %v437 = vld [vmem:[%s435] ss:$-48 sm:%s436]
    %vm438 = vcmask 1046533
    %v439 = vsel %vm438, %v437, %v434
    %s440 = scalar_lea.vmem %s0, 107
    %v441 = vld [vmem:[%s440] sm:$0x80]
    %vm442 = vcmask 1047559
    %v443 = vsel %vm442, %v441, %v439
    %444 = vrot.lane.b32.xlu0 %v443, 16
    %v445 = vpop.permute.xlu0 %444
    %vm446 = vcmask 195712
    %447 = vst.msk [vmem:[#allocation0] sm:$0x3] %vm446, %v445
    %s448 = scalar_lea.vmem [#allocation0], 6
    %449 = vst.msk [vmem:[%s448] sm:$0xc] %vm446, %v445
    %s450 = scalar_lea.vmem [#allocation0], 12
    %451 = vst.msk [vmem:[%s450] sm:$0x30] %vm446, %v445
    %s452 = scalar_lea.vmem [#allocation0], 18
    %453 = vst.msk [vmem:[%s452] sm:$0xc0] %vm446, %v445
    %s454 = scalar_lea.vmem %s0, 1
    %v455 = vld [vmem:[%s454] sm:$0x1]
    %s456 = scalar_lea.vmem %s0, 113
    %s457 = smov 6
    %v458 = vld [vmem:[%s456] ss:$-48 sm:%s457]
    %vm459 = vcmask 1042433
    %v460 = vsel %vm459, %v458, %v455
    %s461 = scalar_lea.vmem %s0, 225
    %s462 = smov 24
    %v463 = vld [vmem:[%s461] ss:$-48 sm:%s462]
    %vm464 = vcmask 1044483
    %v465 = vsel %vm464, %v463, %v460
    %s466 = scalar_lea.vmem %s0, 337
    %s467 = smov 96
    %v468 = vld [vmem:[%s466] ss:$-48 sm:%s467]
    %vm469 = vcmask 1046533
    %v470 = vsel %vm469, %v468, %v465
    %s471 = scalar_lea.vmem %s0, 106
    %v472 = vld [vmem:[%s471] sm:$0x80]
    %vm473 = vcmask 1047559
    %v474 = vsel %vm473, %v472, %v470
    %475 = vrot.lane.b32.xlu0 %v474, 8
    %v476 = vpop.permute.xlu0 %475
    %vm477 = vcmask 130112
    %478 = vst.msk [vmem:[#allocation0] sm:$0x3] %vm477, %v476
    %s479 = scalar_lea.vmem [#allocation0], 6
    %480 = vst.msk [vmem:[%s479] sm:$0xc] %vm477, %v476
    %s481 = scalar_lea.vmem [#allocation0], 12
    %482 = vst.msk [vmem:[%s481] sm:$0x30] %vm477, %v476
    %s483 = scalar_lea.vmem [#allocation0], 18
    %484 = vst.msk [vmem:[%s483] sm:$0xc0] %vm477, %v476
    %s486 = sshll.u32 1, 2
    %s487 = ssub.s32 %s486, 1
    %v489 = vld [vmem:[#allocation0] sm:%s487]
    %s490 = sshll.u32 1, 2
    %s491 = ssub.s32 %s490, 1
    %492 = vst [vmem:[%s1] sm:%s491] %v489
    %s493 = scalar_lea.vmem [#allocation0], 8
    %v494 = vld [vmem:[%s493] sm:%s487]
    %s495 = sshll.u32 1, 2
    %s496 = ssub.s32 %s495, 1
    %s497 = scalar_lea.vmem %s1, 2
    %498 = vst [vmem:[%s497] sm:%s496] %v494
    %s499 = scalar_lea.vmem [#allocation0], 16
    %v500 = vld [vmem:[%s499] sm:%s487]
    %s501 = sshll.u32 1, 2
    %s502 = ssub.s32 %s501, 1
    %s503 = smul.addr 2, 2
    %s504 = scalar_lea.vmem %s1, %s503
    %505 = vst [vmem:[%s504] sm:%s502] %v500
    %s506 = scalar_lea.vmem [#allocation0], 24
    %v507 = vld [vmem:[%s506] sm:%s487]
    %s508 = sshll.u32 1, 2
    %s509 = ssub.s32 %s508, 1
    %s510 = smul.addr 2, 3
    %s511 = scalar_lea.vmem %s1, %s510
    %512 = vst [vmem:[%s511] sm:%s509] %v507

// kernel: squeeze.3
$region0: #{squeeze.3}
  %s0 = inlined_call_operand.vmem [shape: f32[2,1,8,8,8], index: 0, kind: input, shape index: {}]
  %s1 = inlined_call_operand.vmem [shape: f32[2,1,512], index: 1, kind: output, shape index: {}]
  $region1: #{squeeze.3} parent=0
    #allocation0 [shape = 'u8[16384]{0}', space=vmem, size = 0x4000, scoped, tag = 'scoped mem for output reshape']
    %s2 = smov 3
    %v3 = vld [vmem:[%s0] ss:$16 sm:%s2]
    %s4 = smov 12
    %v5 = vld [vmem:[%s0] ss:$16 sm:%s4]
    %vm6 = vcmask 1043458
    %v7 = vsel %vm6, %v5, %v3
    %s8 = smov 48
    %v9 = vld [vmem:[%s0] ss:$16 sm:%s8]
    %vm10 = vcmask 1045508
    %v11 = vsel %vm10, %v9, %v7
    %s12 = smov 192
    %v13 = vld [vmem:[%s0] ss:$16 sm:%s12]
    %vm14 = vcmask 1047558
    %v15 = vsel %vm14, %v13, %v11
    %vm16 = vcmask 64512
    %17 = vst.msk [vmem:[#allocation0] ss:$8 sm:$0xf] %vm16, %v15
    %s18 = scalar_lea.vmem [#allocation0], 4294967265
    %19 = vst.msk [vmem:[%s18] ss:$8 sm:$0xf0] %vm16, %v15
    %s20 = scalar_lea.vmem %s0, 15
    %v21 = vld [vmem:[%s20] sm:$0x1]
    %s22 = scalar_lea.vmem %s0, 127
    %s23 = smov 6
    %v24 = vld [vmem:[%s22] ss:$-48 sm:%s23]
    %vm25 = vcmask 1042433
    %v26 = vsel %vm25, %v24, %v21
    %s27 = scalar_lea.vmem %s0, 239
    %s28 = smov 24
    %v29 = vld [vmem:[%s27] ss:$-48 sm:%s28]
    %vm30 = vcmask 1044483
    %v31 = vsel %vm30, %v29, %v26
    %s32 = scalar_lea.vmem %s0, 351
    %s33 = smov 96
    %v34 = vld [vmem:[%s32] ss:$-48 sm:%s33]
    %vm35 = vcmask 1046533
    %v36 = vsel %vm35, %v34, %v31
    %s37 = scalar_lea.vmem %s0, 120
    %v38 = vld [vmem:[%s37] sm:$0x80]
    %vm39 = vcmask 1047559
    %v40 = vsel %vm39, %v38, %v36
    %41 = vrot.lane.b32.xlu0 %v40, 120
    %v42 = vpop.permute.xlu0 %41
    %vm43 = vcmask 1048512
    %44 = vst.msk [vmem:[#allocation0] sm:$0x3] %vm43, %v42
    %s45 = scalar_lea.vmem [#allocation0], 6
    %46 = vst.msk [vmem:[%s45] sm:$0xc] %vm43, %v42
    %s47 = scalar_lea.vmem [#allocation0], 12
    %48 = vst.msk [vmem:[%s47] sm:$0x30] %vm43, %v42
    %s49 = scalar_lea.vmem [#allocation0], 18
    %50 = vst.msk [vmem:[%s49] sm:$0xc0] %vm43, %v42
    %s51 = scalar_lea.vmem %s0, 14
    %v52 = vld [vmem:[%s51] sm:$0x1]
    %s53 = scalar_lea.vmem %s0, 126
    %s54 = smov 6
    %v55 = vld [vmem:[%s53] ss:$-48 sm:%s54]
    %vm56 = vcmask 1042433
    %v57 = vsel %vm56, %v55, %v52
    %s58 = scalar_lea.vmem %s0, 238
    %s59 = smov 24
    %v60 = vld [vmem:[%s58] ss:$-48 sm:%s59]
    %vm61 = vcmask 1044483
    %v62 = vsel %vm61, %v60, %v57
    %s63 = scalar_lea.vmem %s0, 350
    %s64 = smov 96
    %v65 = vld [vmem:[%s63] ss:$-48 sm:%s64]
    %vm66 = vcmask 1046533
    %v67 = vsel %vm66, %v65, %v62
    %s68 = scalar_lea.vmem %s0, 119
    %v69 = vld [vmem:[%s68] sm:$0x80]
    %vm70 = vcmask 1047559
    %v71 = vsel %vm70, %v69, %v67
    %72 = vrot.lane.b32.xlu0 %v71, 112
    %v73 = vpop.permute.xlu0 %72
    %vm74 = vcmask 982912
    %75 = vst.msk [vmem:[#allocation0] sm:$0x3] %vm74, %v73
    %s76 = scalar_lea.vmem [#allocation0], 6
    %77 = vst.msk [vmem:[%s76] sm:$0xc] %vm74, %v73
    %s78 = scalar_lea.vmem [#allocation0], 12
    %79 = vst.msk [vmem:[%s78] sm:$0x30] %vm74, %v73
    %s80 = scalar_lea.vmem [#allocation0], 18
    %81 = vst.msk [vmem:[%s80] sm:$0xc0] %vm74, %v73
    %s82 = scalar_lea.vmem %s0, 13
    %v83 = vld [vmem:[%s82] sm:$0x1]
    %s84 = scalar_lea.vmem %s0, 125
    %s85 = smov 6
    %v86 = vld [vmem:[%s84] ss:$-48 sm:%s85]
    %vm87 = vcmask 1042433
    %v88 = vsel %vm87, %v86, %v83
    %s89 = scalar_lea.vmem %s0, 237
    %s90 = smov 24
    %v91 = vld [vmem:[%s89] ss:$-48 sm:%s90]
    %vm92 = vcmask 1044483
    %v93 = vsel %vm92, %v91, %v88
    %s94 = scalar_lea.vmem %s0, 349
    %s95 = smov 96
    %v96 = vld [vmem:[%s94] ss:$-48 sm:%s95]
    %vm97 = vcmask 1046533
    %v98 = vsel %vm97, %v96, %v93
    %s99 = scalar_lea.vmem %s0, 118
    %v100 = vld [vmem:[%s99] sm:$0x80]
    %vm101 = vcmask 1047559
    %v102 = vsel %vm101, %v100, %v98
    %103 = vrot.lane.b32.xlu0 %v102, 104
    %v104 = vpop.permute.xlu0 %103
    %vm105 = vcmask 917312
    %106 = vst.msk [vmem:[#allocation0] sm:$0x3] %vm105, %v104
    %s107 = scalar_lea.vmem [#allocation0], 6
    %108 = vst.msk [vmem:[%s107] sm:$0xc] %vm105, %v104
    %s109 = scalar_lea.vmem [#allocation0], 12
    %110 = vst.msk [vmem:[%s109] sm:$0x30] %vm105, %v104
    %s111 = scalar_lea.vmem [#allocation0], 18
    %112 = vst.msk [vmem:[%s111] sm:$0xc0] %vm105, %v104
    %s113 = scalar_lea.vmem %s0, 12
    %v114 = vld [vmem:[%s113] sm:$0x1]
    %s115 = scalar_lea.vmem %s0, 124
    %s116 = smov 6
    %v117 = vld [vmem:[%s115] ss:$-48 sm:%s116]
    %vm118 = vcmask 1042433
    %v119 = vsel %vm118, %v117, %v114
    %s120 = scalar_lea.vmem %s0, 236
    %s121 = smov 24
    %v122 = vld [vmem:[%s120] ss:$-48 sm:%s121]
    %vm123 = vcmask 1044483
    %v124 = vsel %vm123, %v122, %v119
    %s125 = scalar_lea.vmem %s0, 348
    %s126 = smov 96
    %v127 = vld [vmem:[%s125] ss:$-48 sm:%s126]
    %vm128 = vcmask 1046533
    %v129 = vsel %vm128, %v127, %v124
    %s130 = scalar_lea.vmem %s0, 117
    %v131 = vld [vmem:[%s130] sm:$0x80]
    %vm132 = vcmask 1047559
    %v133 = vsel %vm132, %v131, %v129
    %134 = vrot.lane.b32.xlu0 %v133, 96
    %v135 = vpop.permute.xlu0 %134
    %vm136 = vcmask 851712
    %137 = vst.msk [vmem:[#allocation0] sm:$0x3] %vm136, %v135
    %s138 = scalar_lea.vmem [#allocation0], 6
    %139 = vst.msk [vmem:[%s138] sm:$0xc] %vm136, %v135
    %s140 = scalar_lea.vmem [#allocation0], 12
    %141 = vst.msk [vmem:[%s140] sm:$0x30] %vm136, %v135
    %s142 = scalar_lea.vmem [#allocation0], 18
    %143 = vst.msk [vmem:[%s142] sm:$0xc0] %vm136, %v135
    %s144 = scalar_lea.vmem %s0, 11
    %v145 = vld [vmem:[%s144] sm:$0x1]
    %s146 = scalar_lea.vmem %s0, 123
    %s147 = smov 6
    %v148 = vld [vmem:[%s146] ss:$-48 sm:%s147]
    %vm149 = vcmask 1042433
    %v150 = vsel %vm149, %v148, %v145
    %s151 = scalar_lea.vmem %s0, 235
    %s152 = smov 24
    %v153 = vld [vmem:[%s151] ss:$-48 sm:%s152]
    %vm154 = vcmask 1044483
    %v155 = vsel %vm154, %v153, %v150
    %s156 = scalar_lea.vmem %s0, 347
    %s157 = smov 96
    %v158 = vld [vmem:[%s156] ss:$-48 sm:%s157]
    %vm159 = vcmask 1046533
    %v160 = vsel %vm159, %v158, %v155
    %s161 = scalar_lea.vmem %s0, 116
    %v162 = vld [vmem:[%s161] sm:$0x80]
    %vm163 = vcmask 1047559
    %v164 = vsel %vm163, %v162, %v160
    %165 = vrot.lane.b32.xlu0 %v164, 88
    %v166 = vpop.permute.xlu0 %165
    %vm167 = vcmask 786112
    %168 = vst.msk [vmem:[#allocation0] sm:$0x3] %vm167, %v166
    %s169 = scalar_lea.vmem [#allocation0], 6
    %170 = vst.msk [vmem:[%s169] sm:$0xc] %vm167, %v166
    %s171 = scalar_lea.vmem [#allocation0], 12
    %172 = vst.msk [vmem:[%s171] sm:$0x30] %vm167, %v166
    %s173 = scalar_lea.vmem [#allocation0], 18
    %174 = vst.msk [vmem:[%s173] sm:$0xc0] %vm167, %v166
    %s175 = scalar_lea.vmem %s0, 10
    %v176 = vld [vmem:[%s175] sm:$0x1]
    %s177 = scalar_lea.vmem %s0, 122
    %s178 = smov 6
    %v179 = vld [vmem:[%s177] ss:$-48 sm:%s178]
    %vm180 = vcmask 1042433
    %v181 = vsel %vm180, %v179, %v176
    %s182 = scalar_lea.vmem %s0, 234
    %s183 = smov 24
    %v184 = vld [vmem:[%s182] ss:$-48 sm:%s183]
    %vm185 = vcmask 1044483
    %v186 = vsel %vm185, %v184, %v181
    %s187 = scalar_lea.vmem %s0, 346
    %s188 = smov 96
    %v189 = vld [vmem:[%s187] ss:$-48 sm:%s188]
    %vm190 = vcmask 1046533
    %v191 = vsel %vm190, %v189, %v186
    %s192 = scalar_lea.vmem %s0, 115
    %v193 = vld [vmem:[%s192] sm:$0x80]
    %vm194 = vcmask 1047559
    %v195 = vsel %vm194, %v193, %v191
    %196 = vrot.lane.b32.xlu0 %v195, 80
    %v197 = vpop.permute.xlu0 %196
    %vm198 = vcmask 720512
    %199 = vst.msk [vmem:[#allocation0] sm:$0x3] %vm198, %v197
    %s200 = scalar_lea.vmem [#allocation0], 6
    %201 = vst.msk [vmem:[%s200] sm:$0xc] %vm198, %v197
    %s202 = scalar_lea.vmem [#allocation0], 12
    %203 = vst.msk [vmem:[%s202] sm:$0x30] %vm198, %v197
    %s204 = scalar_lea.vmem [#allocation0], 18
    %205 = vst.msk [vmem:[%s204] sm:$0xc0] %vm198, %v197
    %s206 = scalar_lea.vmem %s0, 9
    %v207 = vld [vmem:[%s206] sm:$0x1]
    %s208 = scalar_lea.vmem %s0, 121
    %s209 = smov 6
    %v210 = vld [vmem:[%s208] ss:$-48 sm:%s209]
    %vm211 = vcmask 1042433
    %v212 = vsel %vm211, %v210, %v207
    %s213 = scalar_lea.vmem %s0, 233
    %s214 = smov 24
    %v215 = vld [vmem:[%s213] ss:$-48 sm:%s214]
    %vm216 = vcmask 1044483
    %v217 = vsel %vm216, %v215, %v212
    %s218 = scalar_lea.vmem %s0, 345
    %s219 = smov 96
    %v220 = vld [vmem:[%s218] ss:$-48 sm:%s219]
    %vm221 = vcmask 1046533
    %v222 = vsel %vm221, %v220, %v217
    %s223 = scalar_lea.vmem %s0, 114
    %v224 = vld [vmem:[%s223] sm:$0x80]
    %vm225 = vcmask 1047559
    %v226 = vsel %vm225, %v224, %v222
    %227 = vrot.lane.b32.xlu0 %v226, 72
    %v228 = vpop.permute.xlu0 %227
    %vm229 = vcmask 654912
    %230 = vst.msk [vmem:[#allocation0] sm:$0x3] %vm229, %v228
    %s231 = scalar_lea.vmem [#allocation0], 6
    %232 = vst.msk [vmem:[%s231] sm:$0xc] %vm229, %v228
    %s233 = scalar_lea.vmem [#allocation0], 12
    %234 = vst.msk [vmem:[%s233] sm:$0x30] %vm229, %v228
    %s235 = scalar_lea.vmem [#allocation0], 18
    %236 = vst.msk [vmem:[%s235] sm:$0xc0] %vm229, %v228
    %s237 = scalar_lea.vmem %s0, 8
    %v238 = vld [vmem:[%s237] sm:$0x1]
    %s239 = scalar_lea.vmem %s0, 120
    %s240 = smov 6
    %v241 = vld [vmem:[%s239] ss:$-48 sm:%s240]
    %vm242 = vcmask 1042433
    %v243 = vsel %vm242, %v241, %v238
    %s244 = scalar_lea.vmem %s0, 232
    %s245 = smov 24
    %v246 = vld [vmem:[%s244] ss:$-48 sm:%s245]
    %vm247 = vcmask 1044483
    %v248 = vsel %vm247, %v246, %v243
    %s249 = scalar_lea.vmem %s0, 344
    %s250 = smov 96
    %v251 = vld [vmem:[%s249] ss:$-48 sm:%s250]
    %vm252 = vcmask 1046533
    %v253 = vsel %vm252, %v251, %v248
    %s254 = scalar_lea.vmem %s0, 113
    %v255 = vld [vmem:[%s254] sm:$0x80]
    %vm256 = vcmask 1047559
    %v257 = vsel %vm256, %v255, %v253
    %258 = vrot.lane.b32.xlu0 %v257, 64
    %v259 = vpop.permute.xlu0 %258
    %vm260 = vcmask 589312
    %261 = vst.msk [vmem:[#allocation0] sm:$0x3] %vm260, %v259
    %s262 = scalar_lea.vmem [#allocation0], 6
    %263 = vst.msk [vmem:[%s262] sm:$0xc] %vm260, %v259
    %s264 = scalar_lea.vmem [#allocation0], 12
    %265 = vst.msk [vmem:[%s264] sm:$0x30] %vm260, %v259
    %s266 = scalar_lea.vmem [#allocation0], 18
    %267 = vst.msk [vmem:[%s266] sm:$0xc0] %vm260, %v259
    %s268 = scalar_lea.vmem %s0, 7
    %v269 = vld [vmem:[%s268] sm:$0x1]
    %s270 = scalar_lea.vmem %s0, 119
    %s271 = smov 6
    %v272 = vld [vmem:[%s270] ss:$-48 sm:%s271]
    %vm273 = vcmask 1042433
    %v274 = vsel %vm273, %v272, %v269
    %s275 = scalar_lea.vmem %s0, 231
    %s276 = smov 24
    %v277 = vld [vmem:[%s275] ss:$-48 sm:%s276]
    %vm278 = vcmask 1044483
    %v279 = vsel %vm278, %v277, %v274
    %s280 = scalar_lea.vmem %s0, 343
    %s281 = smov 96
    %v282 = vld [vmem:[%s280] ss:$-48 sm:%s281]
    %vm283 = vcmask 1046533
    %v284 = vsel %vm283, %v282, %v279
    %s285 = scalar_lea.vmem %s0, 112
    %v286 = vld [vmem:[%s285] sm:$0x80]
    %vm287 = vcmask 1047559
    %v288 = vsel %vm287, %v286, %v284
    %289 = vrot.lane.b32.xlu0 %v288, 56
    %v290 = vpop.permute.xlu0 %289
    %vm291 = vcmask 523712
    %292 = vst.msk [vmem:[#allocation0] sm:$0x3] %vm291, %v290
    %s293 = scalar_lea.vmem [#allocation0], 6
    %294 = vst.msk [vmem:[%s293] sm:$0xc] %vm291, %v290
    %s295 = scalar_lea.vmem [#allocation0], 12
    %296 = vst.msk [vmem:[%s295] sm:$0x30] %vm291, %v290
    %s297 = scalar_lea.vmem [#allocation0], 18
    %298 = vst.msk [vmem:[%s297] sm:$0xc0] %vm291, %v290
    %s299 = scalar_lea.vmem %s0, 6
    %v300 = vld [vmem:[%s299] sm:$0x1]
    %s301 = scalar_lea.vmem %s0, 118
    %s302 = smov 6
    %v303 = vld [vmem:[%s301] ss:$-48 sm:%s302]
    %vm304 = vcmask 1042433
    %v305 = vsel %vm304, %v303, %v300
    %s306 = scalar_lea.vmem %s0, 230
    %s307 = smov 24
    %v308 = vld [vmem:[%s306] ss:$-48 sm:%s307]
    %vm309 = vcmask 1044483
    %v310 = vsel %vm309, %v308, %v305
    %s311 = scalar_lea.vmem %s0, 342
    %s312 = smov 96
    %v313 = vld [vmem:[%s311] ss:$-48 sm:%s312]
    %vm314 = vcmask 1046533
    %v315 = vsel %vm314, %v313, %v310
    %s316 = scalar_lea.vmem %s0, 111
    %v317 = vld [vmem:[%s316] sm:$0x80]
    %vm318 = vcmask 1047559
    %v319 = vsel %vm318, %v317, %v315
    %320 = vrot.lane.b32.xlu0 %v319, 48
    %v321 = vpop.permute.xlu0 %320
    %vm322 = vcmask 458112
    %323 = vst.msk [vmem:[#allocation0] sm:$0x3] %vm322, %v321
    %s324 = scalar_lea.vmem [#allocation0], 6
    %325 = vst.msk [vmem:[%s324] sm:$0xc] %vm322, %v321
    %s326 = scalar_lea.vmem [#allocation0], 12
    %327 = vst.msk [vmem:[%s326] sm:$0x30] %vm322, %v321
    %s328 = scalar_lea.vmem [#allocation0], 18
    %329 = vst.msk [vmem:[%s328] sm:$0xc0] %vm322, %v321
    %s330 = scalar_lea.vmem %s0, 5
    %v331 = vld [vmem:[%s330] sm:$0x1]
    %s332 = scalar_lea.vmem %s0, 117
    %s333 = smov 6
    %v334 = vld [vmem:[%s332] ss:$-48 sm:%s333]
    %vm335 = vcmask 1042433
    %v336 = vsel %vm335, %v334, %v331
    %s337 = scalar_lea.vmem %s0, 229
    %s338 = smov 24
    %v339 = vld [vmem:[%s337] ss:$-48 sm:%s338]
    %vm340 = vcmask 1044483
    %v341 = vsel %vm340, %v339, %v336
    %s342 = scalar_lea.vmem %s0, 341
    %s343 = smov 96
    %v344 = vld [vmem:[%s342] ss:$-48 sm:%s343]
    %vm345 = vcmask 1046533
    %v346 = vsel %vm345, %v344, %v341
    %s347 = scalar_lea.vmem %s0, 110
    %v348 = vld [vmem:[%s347] sm:$0x80]
    %vm349 = vcmask 1047559
    %v350 = vsel %vm349, %v348, %v346
    %351 = vrot.lane.b32.xlu0 %v350, 40
    %v352 = vpop.permute.xlu0 %351
    %vm353 = vcmask 392512
    %354 = vst.msk [vmem:[#allocation0] sm:$0x3] %vm353, %v352
    %s355 = scalar_lea.vmem [#allocation0], 6
    %356 = vst.msk [vmem:[%s355] sm:$0xc] %vm353, %v352
    %s357 = scalar_lea.vmem [#allocation0], 12
    %358 = vst.msk [vmem:[%s357] sm:$0x30] %vm353, %v352
    %s359 = scalar_lea.vmem [#allocation0], 18
    %360 = vst.msk [vmem:[%s359] sm:$0xc0] %vm353, %v352
    %s361 = scalar_lea.vmem %s0, 4
    %v362 = vld [vmem:[%s361] sm:$0x1]
    %s363 = scalar_lea.vmem %s0, 116
    %s364 = smov 6
    %v365 = vld [vmem:[%s363] ss:$-48 sm:%s364]
    %vm366 = vcmask 1042433
    %v367 = vsel %vm366, %v365, %v362
    %s368 = scalar_lea.vmem %s0, 228
    %s369 = smov 24
    %v370 = vld [vmem:[%s368] ss:$-48 sm:%s369]
    %vm371 = vcmask 1044483
    %v372 = vsel %vm371, %v370, %v367
    %s373 = scalar_lea.vmem %s0, 340
    %s374 = smov 96
    %v375 = vld [vmem:[%s373] ss:$-48 sm:%s374]
    %vm376 = vcmask 1046533
    %v377 = vsel %vm376, %v375, %v372
    %s378 = scalar_lea.vmem %s0, 109
    %v379 = vld [vmem:[%s378] sm:$0x80]
    %vm380 = vcmask 1047559
    %v381 = vsel %vm380, %v379, %v377
    %382 = vrot.lane.b32.xlu0 %v381, 32
    %v383 = vpop.permute.xlu0 %382
    %vm384 = vcmask 326912
    %385 = vst.msk [vmem:[#allocation0] sm:$0x3] %vm384, %v383
    %s386 = scalar_lea.vmem [#allocation0], 6
    %387 = vst.msk [vmem:[%s386] sm:$0xc] %vm384, %v383
    %s388 = scalar_lea.vmem [#allocation0], 12
    %389 = vst.msk [vmem:[%s388] sm:$0x30] %vm384, %v383
    %s390 = scalar_lea.vmem [#allocation0], 18
    %391 = vst.msk [vmem:[%s390] sm:$0xc0] %vm384, %v383
    %s392 = scalar_lea.vmem %s0, 3
    %v393 = vld [vmem:[%s392] sm:$0x1]
    %s394 = scalar_lea.vmem %s0, 115
    %s395 = smov 6
    %v396 = vld [vmem:[%s394] ss:$-48 sm:%s395]
    %vm397 = vcmask 1042433
    %v398 = vsel %vm397, %v396, %v393
    %s399 = scalar_lea.vmem %s0, 227
    %s400 = smov 24
    %v401 = vld [vmem:[%s399] ss:$-48 sm:%s400]
    %vm402 = vcmask 1044483
    %v403 = vsel %vm402, %v401, %v398
    %s404 = scalar_lea.vmem %s0, 339
    %s405 = smov 96
    %v406 = vld [vmem:[%s404] ss:$-48 sm:%s405]
    %vm407 = vcmask 1046533
    %v408 = vsel %vm407, %v406, %v403
    %s409 = scalar_lea.vmem %s0, 108
    %v410 = vld [vmem:[%s409] sm:$0x80]
    %vm411 = vcmask 1047559
    %v412 = vsel %vm411, %v410, %v408
    %413 = vrot.lane.b32.xlu0 %v412, 24
    %v414 = vpop.permute.xlu0 %413
    %vm415 = vcmask 261312
    %416 = vst.msk [vmem:[#allocation0] sm:$0x3] %vm415, %v414
    %s417 = scalar_lea.vmem [#allocation0], 6
    %418 = vst.msk [vmem:[%s417] sm:$0xc] %vm415, %v414
    %s419 = scalar_lea.vmem [#allocation0], 12
    %420 = vst.msk [vmem:[%s419] sm:$0x30] %vm415, %v414
    %s421 = scalar_lea.vmem [#allocation0], 18
    %422 = vst.msk [vmem:[%s421] sm:$0xc0] %vm415, %v414
    %s423 = scalar_lea.vmem %s0, 2
    %v424 = vld [vmem:[%s423] sm:$0x1]
    %s425 = scalar_lea.vmem %s0, 114
    %s426 = smov 6
    %v427 = vld [vmem:[%s425] ss:$-48 sm:%s426]
    %vm428 = vcmask 1042433
    %v429 = vsel %vm428, %v427, %v424
    %s430 = scalar_lea.vmem %s0, 226
    %s431 = smov 24
    %v432 = vld [vmem:[%s430] ss:$-48 sm:%s431]
    %vm433 = vcmask 1044483
    %v434 = vsel %vm433, %v432, %v429
    %s435 = scalar_lea.vmem %s0, 338
    %s436 = smov 96
    %v437 = vld [vmem:[%s435] ss:$-48 sm:%s436]
    %vm438 = vcmask 1046533
    %v439 = vsel %vm438, %v437, %v434
    %s440 = scalar_lea.vmem %s0, 107
    %v441 = vld [vmem:[%s440] sm:$0x80]
    %vm442 = vcmask 1047559
    %v443 = vsel %vm442, %v441, %v439
    %444 = vrot.lane.b32.xlu0 %v443, 16
    %v445 = vpop.permute.xlu0 %444
    %vm446 = vcmask 195712
    %447 = vst.msk [vmem:[#allocation0] sm:$0x3] %vm446, %v445
    %s448 = scalar_lea.vmem [#allocation0], 6
    %449 = vst.msk [vmem:[%s448] sm:$0xc] %vm446, %v445
    %s450 = scalar_lea.vmem [#allocation0], 12
    %451 = vst.msk [vmem:[%s450] sm:$0x30] %vm446, %v445
    %s452 = scalar_lea.vmem [#allocation0], 18
    %453 = vst.msk [vmem:[%s452] sm:$0xc0] %vm446, %v445
    %s454 = scalar_lea.vmem %s0, 1
    %v455 = vld [vmem:[%s454] sm:$0x1]
    %s456 = scalar_lea.vmem %s0, 113
    %s457 = smov 6
    %v458 = vld [vmem:[%s456] ss:$-48 sm:%s457]
    %vm459 = vcmask 1042433
    %v460 = vsel %vm459, %v458, %v455
    %s461 = scalar_lea.vmem %s0, 225
    %s462 = smov 24
    %v463 = vld [vmem:[%s461] ss:$-48 sm:%s462]
    %vm464 = vcmask 1044483
    %v465 = vsel %vm464, %v463, %v460
    %s466 = scalar_lea.vmem %s0, 337
    %s467 = smov 96
    %v468 = vld [vmem:[%s466] ss:$-48 sm:%s467]
    %vm469 = vcmask 1046533
    %v470 = vsel %vm469, %v468, %v465
    %s471 = scalar_lea.vmem %s0, 106
    %v472 = vld [vmem:[%s471] sm:$0x80]
    %vm473 = vcmask 1047559
    %v474 = vsel %vm473, %v472, %v470
    %475 = vrot.lane.b32.xlu0 %v474, 8
    %v476 = vpop.permute.xlu0 %475
    %vm477 = vcmask 130112
    %478 = vst.msk [vmem:[#allocation0] sm:$0x3] %vm477, %v476
    %s479 = scalar_lea.vmem [#allocation0], 6
    %480 = vst.msk [vmem:[%s479] sm:$0xc] %vm477, %v476
    %s481 = scalar_lea.vmem [#allocation0], 12
    %482 = vst.msk [vmem:[%s481] sm:$0x30] %vm477, %v476
    %s483 = scalar_lea.vmem [#allocation0], 18
    %484 = vst.msk [vmem:[%s483] sm:$0xc0] %vm477, %v476
    %s486 = sshll.u32 1, 2
    %s487 = ssub.s32 %s486, 1
    %v489 = vld [vmem:[#allocation0] sm:%s487]
    %s490 = sshll.u32 1, 2
    %s491 = ssub.s32 %s490, 1
    %492 = vst [vmem:[%s1] sm:%s491] %v489
    %s493 = scalar_lea.vmem [#allocation0], 8
    %v494 = vld [vmem:[%s493] sm:%s487]
    %s495 = sshll.u32 1, 2
    %s496 = ssub.s32 %s495, 1
    %s497 = scalar_lea.vmem %s1, 2
    %498 = vst [vmem:[%s497] sm:%s496] %v494
    %s499 = scalar_lea.vmem [#allocation0], 16
    %v500 = vld [vmem:[%s499] sm:%s487]
    %s501 = sshll.u32 1, 2
    %s502 = ssub.s32 %s501, 1
    %s503 = smul.addr 2, 2
    %s504 = scalar_lea.vmem %s1, %s503
    %505 = vst [vmem:[%s504] sm:%s502] %v500
    %s506 = scalar_lea.vmem [#allocation0], 24
    %v507 = vld [vmem:[%s506] sm:%s487]
    %s508 = sshll.u32 1, 2
    %s509 = ssub.s32 %s508, 1
    %s510 = smul.addr 2, 3
    %s511 = scalar_lea.vmem %s1, %s510
    %512 = vst [vmem:[%s511] sm:%s509] %v507

// kernel: jepa_forward.2
$region0: #{jepa_forward.2}
  #allocation0 [shape = 'u32[]', space=smem, size = 0x4, offset = 0x4, fixed_abs, tag = 'smem constant byte address 0x4 - core index']
  #allocation1 [shape = 'u32[144,128]{1,0:T(1,128)}', space=vmem, size = 0x12000, scoped, tag = 'internal scratch']
  %s0 = inlined_call_operand.vmem [shape: bf16[8,36], index: 0, kind: input, shape index: {}]
  %s1 = inlined_call_operand.vmem [shape: bf16[36,512], index: 1, kind: input, shape index: {}]
  %s2 = inlined_call_operand.vmem [shape: f32[8,1], index: 2, kind: input, shape index: {}]
  %s3 = inlined_call_operand.vmem [shape: f32[8,512], index: 3, kind: output, shape index: {}]
  %s4 = sld [smem:[#allocation0]]
  $region22: #{jepa_forward.2} parent=0
    _
  %s6 = ssub.s32 1, %s4
  %s7 = scalar_select 0, %s6, %s4
  // Predicated region
  $region2: #{jepa_forward.2} parent=0 // pred_check
    _
  $region3: #{jepa_forward.2} parent=0 // pred_check_branch
    %9 = sbr.rel (0) target = $region5
  $region4: #{jepa_forward.2} parent=0 // pred_region
    _
  $region5: #{jepa_forward.2} parent=0 // pred_fallthru
    _
  // Predicated region
  $region6: #{jepa_forward.2} parent=0 // pred_check
    _
  $region7: #{jepa_forward.2} parent=0 // pred_check_branch
    %11 = sbr.rel (0) target = $region9
  $region8: #{jepa_forward.2} parent=0 // pred_region
    _
  $region9: #{jepa_forward.2} parent=0 // pred_fallthru
    _
  // Predicated region
  $region10: #{jepa_forward.2} parent=0 // pred_check
    _
  $region11: #{jepa_forward.2} parent=0 // pred_check_branch
    %13 = sbr.rel (0) target = $region13
  $region12: #{jepa_forward.2} parent=0 // pred_region
    _
  $region13: #{jepa_forward.2} parent=0 // pred_fallthru
    _
  %v15 = vld [vmem:[%s0] sm:$0xf]
  %v16 = vld [vmem:[%s1] sm:$0xff]
  %v17 = vld [vmem:[%s1 + $0x8] sm:$0xff]
  %v18 = vld [vmem:[%s1 + $0x10] sm:$0xff]
  %v19 = vld [vmem:[%s1 + $0x18] sm:$0xff]
  %v20 = vld [vmem:[%s1 + $0x20] sm:$0xff]
  %v21 = vld [vmem:[%s1 + $0x28] sm:$0xff]
  %v22 = vld [vmem:[%s1 + $0x30] sm:$0xff]
  %v23 = vld [vmem:[%s1 + $0x38] sm:$0xff]
  %v24 = vld [vmem:[%s1 + $0x40] sm:$0x33]
  %v25 = vld [vmem:[%s1 + $0x48] sm:$0x33]
  %v26 = vld [vmem:[%s2] sm:$0xff]
  %28 = vset.pattern.permute.xlu0 0
  %29 = vperm.xlu0 %28, %v26
  %v30 = vpop.permute.xlu0 %29
  %v42 = vunpack.c.l.b16 %v16
  %v43 = vunpack.c.h.b16 %v16
  %v44 = vunpack.c.l.b16 %v17
  %v45 = vunpack.c.h.b16 %v17
  %v46 = vunpack.c.l.b16 %v18
  %v47 = vunpack.c.h.b16 %v18
  %v48 = vunpack.c.l.b16 %v19
  %v49 = vunpack.c.h.b16 %v19
  %v50 = vunpack.c.l.b16 %v20
  %v51 = vunpack.c.h.b16 %v20
  %v52 = vunpack.c.l.b16 %v21
  %v53 = vunpack.c.h.b16 %v21
  %v54 = vunpack.c.l.b16 %v22
  %v55 = vunpack.c.h.b16 %v22
  %v56 = vunpack.c.l.b16 %v23
  %v57 = vunpack.c.h.b16 %v23
  %v58 = vunpack.c.l.b16 %v24
  %v59 = vunpack.c.h.b16 %v24
  %v60 = vunpack.c.l.b16 %v25
  %v61 = vunpack.c.h.b16 %v25
  %v62 = vpack.c.b16 %v46, %v42
  %v63 = vpack.c.b16 %v47, %v43
  %v64 = vpack.c.b16 %v48, %v44
  %v65 = vpack.c.b16 %v49, %v45
  %v66 = vpack.c.b16 %v54, %v50
  %v67 = vpack.c.b16 %v55, %v51
  %v68 = vpack.c.b16 %v56, %v52
  %v69 = vpack.c.b16 %v57, %v53
  %v70 = vpack.c.b16 %v58, %v58
  %v71 = vpack.c.b16 %v59, %v59
  %v72 = vpack.c.b16 %v60, %v60
  %v73 = vpack.c.b16 %v61, %v61
  %vm82 = vcmask 293888
  %v84 = vsel %vm82, %v15, 0
  %vm86 = vcmask 1041408
  %v88 = vsel %vm86, %v70, 0
  %v91 = vsel %vm86, %v71, 0
  %v94 = vsel %vm86, %v72, 0
  %v97 = vsel %vm86, %v73, 0
  %99 = vmatprep.subr.bf16.mxu0 0
  %100 = vmatpush1.bf16.msra.mxu0 0
  %101 = vmatprep.subr.bf16.mxu0 0
  %102 = vmatpush1.bf16.msra.mxu0 0
  %103 = vmatprep.subr.bf16.mxu0 0
  %104 = vmatpush1.bf16.msra.mxu0 0
  %105 = vmatprep.subr.bf16.mxu0 0
  %106 = vmatpush1.bf16.msra.mxu0 0
  %107 = vmatprep.subr.bf16.mxu0 0
  %108 = vmatpush1.bf16.msra.mxu0 0
  %109 = vmatprep.subr.bf16.mxu0 %v91
  %110 = vmatpush1.bf16.msra.mxu0 %v88
  %111 = vmatprep.subr.bf16.mxu0 %v67
  %112 = vmatpush1.bf16.msra.mxu0 %v66
  %113 = vmatprep.subr.bf16.mxu0 %v63
  %114 = vmatpush1.bf16.msra.mxu0 %v62
  %115 = vmatprep.subr.bf16.mxu0 0
  %116 = vmatpush2.bf16.msra.mxu0 0
  %117 = vmatprep.subr.bf16.mxu0 0
  %118 = vmatpush2.bf16.msra.mxu0 0
  %119 = vmatprep.subr.bf16.mxu0 0
  %120 = vmatpush2.bf16.msra.mxu0 0
  %121 = vmatprep.subr.bf16.mxu0 0
  %122 = vmatpush2.bf16.msra.mxu0 0
  %123 = vmatprep.subr.bf16.mxu0 0
  %124 = vmatpush2.bf16.msra.mxu0 0
  %125 = vmatprep.subr.bf16.mxu0 0
  %126 = vmatpush2.bf16.msra.mxu0 0
  %127 = vmatprep.subr.bf16.mxu0 0
  %128 = vmatpush2.bf16.msra.mxu0 0
  %129 = vmatprep.subr.bf16.mxu0 0
  %130 = vmatpush2.bf16.msra.mxu0 0
  %131 = vmatprep.mubr.bf16.mxu0 0
  %132 = vmatmul.mubr.bf16.gmra.mxu0 %v84
  %v133 = vpop.f32.mrf.mxu0
  %v134 = vadd.f32 %v30, %v133
  %v135 = vpop.f32.mrf.mxu0
  %v136 = vadd.f32 %v30, %v135
  %v137 = vpop.f32.mrf.mxu0
  %v138 = vpop.f32.mrf.mxu0
  %139 = vdwg.mxu0
  %140 = vmatprep.subr.bf16.mxu0 0
  %141 = vmatpush1.bf16.msra.mxu0 0
  %142 = vmatprep.subr.bf16.mxu0 0
  %143 = vmatpush1.bf16.msra.mxu0 0
  %144 = vmatprep.subr.bf16.mxu0 0
  %145 = vmatpush1.bf16.msra.mxu0 0
  %146 = vmatprep.subr.bf16.mxu0 0
  %147 = vmatpush1.bf16.msra.mxu0 0
  %148 = vmatprep.subr.bf16.mxu0 0
  %149 = vmatpush1.bf16.msra.mxu0 0
  %150 = vmatprep.subr.bf16.mxu0 %v97
  %151 = vmatpush1.bf16.msra.mxu0 %v94
  %152 = vmatprep.subr.bf16.mxu0 %v69
  %153 = vmatpush1.bf16.msra.mxu0 %v68
  %154 = vmatprep.subr.bf16.mxu0 %v65
  %155 = vmatpush1.bf16.msra.mxu0 %v64
  %156 = vmatprep.subr.bf16.mxu0 0
  %157 = vmatpush2.bf16.msra.mxu0 0
  %158 = vmatprep.subr.bf16.mxu0 0
  %159 = vmatpush2.bf16.msra.mxu0 0
  %160 = vmatprep.subr.bf16.mxu0 0
  %161 = vmatpush2.bf16.msra.mxu0 0
  %162 = vmatprep.subr.bf16.mxu0 0
  %163 = vmatpush2.bf16.msra.mxu0 0
  %164 = vmatprep.subr.bf16.mxu0 0
  %165 = vmatpush2.bf16.msra.mxu0 0
  %166 = vmatprep.subr.bf16.mxu0 0
  %167 = vmatpush2.bf16.msra.mxu0 0
  %168 = vmatprep.subr.bf16.mxu0 0
  %169 = vmatpush2.bf16.msra.mxu0 0
  %170 = vmatprep.subr.bf16.mxu0 0
  %171 = vmatpush2.bf16.msra.mxu0 0
  %172 = vmatprep.mubr.bf16.mxu0 0
  %173 = vmatmul.mubr.bf16.gmra.mxu0 %v84
  %v174 = vpop.f32.mrf.mxu0
  %v175 = vadd.f32 %v30, %v174
  %v176 = vpop.f32.mrf.mxu0
  %v177 = vadd.f32 %v30, %v176
  %v178 = vpop.f32.mrf.mxu0
  %v179 = vpop.f32.mrf.mxu0
  %180 = vdwg.mxu0
  %v181 = vmax.f32 %v134, 0.0
  %v182 = vmax.f32 %v136, 0.0
  %v183 = vmax.f32 %v175, 0.0
  %v184 = vmax.f32 %v177, 0.0
  %185 = vst [vmem:[%s3] sm:$0xff] %v181
  %186 = vst [vmem:[%s3 + $0x8] sm:$0xff] %v182
  %187 = vst [vmem:[%s3 + $0x10] sm:$0xff] %v183
  %188 = vst [vmem:[%s3 + $0x18] sm:$0xff] %v184
  // Predicated region
  $region14: #{jepa_forward.2} parent=0 // pred_check
    _
  $region15: #{jepa_forward.2} parent=0 // pred_check_branch
    %190 = sbr.rel (0) target = $region17
  $region16: #{jepa_forward.2} parent=0 // pred_region
    _
  $region17: #{jepa_forward.2} parent=0 // pred_fallthru
    _
  // Predicated region
  $region18: #{jepa_forward.2} parent=0 // pred_check
    _
  $region19: #{jepa_forward.2} parent=0 // pred_check_branch
    %192 = sbr.rel (0) target = $region21
  $region20: #{jepa_forward.2} parent=0 // pred_region
    _
  $region21: #{jepa_forward.2} parent=0 // pred_fallthru
    _

// kernel: jepa_forward.3
$region0: #{jepa_forward.3}
  #allocation0 [shape = 'u32[]', space=smem, size = 0x4, offset = 0x4, fixed_abs, tag = 'smem constant byte address 0x4 - core index']
  #allocation1 [shape = 'u32[144,128]{1,0:T(1,128)}', space=vmem, size = 0x12000, scoped, tag = 'internal scratch']
  #allocation2 [shape = 'f32[2,512]{1,0:T(2,128)}', space=vmem, size = 0x1000, scoped, tag = 'scratch operand']
  %s0 = inlined_call_operand.vmem [shape: f32[2,512], index: 0, kind: input, shape index: {}]
  %s1 = inlined_call_operand.vmem [shape: f32[3,2,2], index: 1, kind: input, shape index: {}]
  %s2 = inlined_call_operand.vmem [shape: bf16[512,512], index: 2, kind: input, shape index: {}]
  %s3 = inlined_call_operand.vmem [shape: f32[2,512], index: 3, kind: input, shape index: {}]
  %s4 = inlined_call_operand.vmem [shape: f32[1,512], index: 4, kind: input, shape index: {}]
  %s5 = inlined_call_operand.vmem [shape: f32[3,2,512], index: 5, kind: output, shape index: {}]
  %s6 = sld [smem:[#allocation0]]
  $region57: #{jepa_forward.3} parent=0
    _
  %s8 = ssub.s32 1, %s6
  %s9 = scalar_select 0, %s8, %s6
  loop: start=0, step=1, limit=5
  $region2: #{jepa_forward.3} parent=0 // loop_pre_header
    _
  $region3: #{jepa_forward.3} parent=0 // loop_header
    %s11 = sphi 0, %s15
    %p12 = scmp.ge.s32.totalorder %s11, 5
    %s19 = sphi 0, %s19
    %s21 = sphi 0, %s19
    %s22 = sphi 0, %s21
    %s36 = sphi 0, %s22
    %s42 = sphi 0, %s44
    %s45 = sphi 0, %s42
    %s46 = sphi 0, %s45
    %s62 = sphi 0, %s46
    %s66 = sphi 0, %s66
    %s68 = sphi 0, %s66
    %s69 = sphi 0, %s68
    %s83 = sphi 0, %s69
    %s87 = sphi 0, %s87
    %s89 = sphi 0, %s87
    %s90 = sphi 0, %s89
    %s104 = sphi 0, %s90
    %s108 = sphi 0, %s108
    %s110 = sphi 0, %s108
    %s111 = sphi 0, %s110
    %s125 = sphi 0, %s111
    %s131 = sphi 0, %s133
    %s134 = sphi 0, %s131
    %s135 = sphi 0, %s134
    %s151 = sphi 0, %s135
  $region4: #{jepa_forward.3} parent=0 // loop_header_branch
    %14 = sbr.rel (%p12) target = $region8
  $region5: #{jepa_forward.3} parent=0 // loop_body
    %s16 = ssub.s32 %s11, 1
    %s17 = ssub.s32 %s11, 2
    %s18 = sadd.s32 %s11, 1
    %s20 = sadd.s32 %s19, 1
    %p23 = scmp.eq.s32.totalorder %s11, 2
    %p24 = scmp.ne.s32.totalorder %s19, %s21
    %p25 = scmp.eq.s32.totalorder %s11, 0
    %p26 = por %p24, %p25
    %p27 = scmp.ne.s32.totalorder %s19, %s21
    %p28 = scmp.eq.s32.totalorder %s16, 2
    %p29 = por %p27, %p28
    %p30 = scmp.ne.s32.totalorder %s21, %s22
    %p31 = scmp.eq.s32.totalorder %s16, 0
    %p32 = por %p30, %p31
    %p33 = scmp.ne.s32.totalorder %s21, %s22
    %p34 = scmp.eq.s32.totalorder %s17, 2
    %p35 = por %p33, %p34
    %p37 = scmp.ne.s32.totalorder %s22, %s36
    %p38 = scmp.eq.s32.totalorder %s17, 0
    %p39 = por %p37, %p38
    %s40 = ssub.s32 %s11, %s18
    %p41 = scmp.eq.s32.totalorder %s40, 0
    %s43 = sadd.s32 %s42, 1
    %s44 = scalar_select %p41, %s42, %s43
    %p47 = pneg %p41
    %p48 = scmp.eq.s32.totalorder %s11, 2
    %p49 = por %p47, %p48
    %p50 = scmp.ne.s32.totalorder %s42, %s45
    %p51 = scmp.eq.s32.totalorder %s11, 0
    %p52 = por %p50, %p51
    %p53 = scmp.ne.s32.totalorder %s42, %s45
    %p54 = scmp.eq.s32.totalorder %s16, 2
    %p55 = por %p53, %p54
    %p56 = scmp.ne.s32.totalorder %s45, %s46
    %p57 = scmp.eq.s32.totalorder %s16, 0
    %p58 = por %p56, %p57
    %p59 = scmp.ne.s32.totalorder %s45, %s46
    %p60 = scmp.eq.s32.totalorder %s17, 2
    %p61 = por %p59, %p60
    %p63 = scmp.ne.s32.totalorder %s46, %s62
    %p64 = scmp.eq.s32.totalorder %s17, 0
    %p65 = por %p63, %p64
    %s67 = sadd.s32 %s66, 1
    %p70 = scmp.eq.s32.totalorder %s11, 2
    %p71 = scmp.ne.s32.totalorder %s66, %s68
    %p72 = scmp.eq.s32.totalorder %s11, 0
    %p73 = por %p71, %p72
    %p74 = scmp.ne.s32.totalorder %s66, %s68
    %p75 = scmp.eq.s32.totalorder %s16, 2
    %p76 = por %p74, %p75
    %p77 = scmp.ne.s32.totalorder %s68, %s69
    %p78 = scmp.eq.s32.totalorder %s16, 0
    %p79 = por %p77, %p78
    %p80 = scmp.ne.s32.totalorder %s68, %s69
    %p81 = scmp.eq.s32.totalorder %s17, 2
    %p82 = por %p80, %p81
    %p84 = scmp.ne.s32.totalorder %s69, %s83
    %p85 = scmp.eq.s32.totalorder %s17, 0
    %p86 = por %p84, %p85
    %s88 = sadd.s32 %s87, 1
    %p91 = scmp.eq.s32.totalorder %s11, 2
    %p92 = scmp.ne.s32.totalorder %s87, %s89
    %p93 = scmp.eq.s32.totalorder %s11, 0
    %p94 = por %p92, %p93
    %p95 = scmp.ne.s32.totalorder %s87, %s89
    %p96 = scmp.eq.s32.totalorder %s16, 2
    %p97 = por %p95, %p96
    %p98 = scmp.ne.s32.totalorder %s89, %s90
    %p99 = scmp.eq.s32.totalorder %s16, 0
    %p100 = por %p98, %p99
    %p101 = scmp.ne.s32.totalorder %s89, %s90
    %p102 = scmp.eq.s32.totalorder %s17, 2
    %p103 = por %p101, %p102
    %p105 = scmp.ne.s32.totalorder %s90, %s104
    %p106 = scmp.eq.s32.totalorder %s17, 0
    %p107 = por %p105, %p106
    %s109 = sadd.s32 %s108, 1
    %p112 = scmp.eq.s32.totalorder %s11, 2
    %p113 = scmp.ne.s32.totalorder %s108, %s110
    %p114 = scmp.eq.s32.totalorder %s11, 0
    %p115 = por %p113, %p114
    %p116 = scmp.ne.s32.totalorder %s108, %s110
    %p117 = scmp.eq.s32.totalorder %s16, 2
    %p118 = por %p116, %p117
    %p119 = scmp.ne.s32.totalorder %s110, %s111
    %p120 = scmp.eq.s32.totalorder %s16, 0
    %p121 = por %p119, %p120
    %p122 = scmp.ne.s32.totalorder %s110, %s111
    %p123 = scmp.eq.s32.totalorder %s17, 2
    %p124 = por %p122, %p123
    %p126 = scmp.ne.s32.totalorder %s111, %s125
    %p127 = scmp.eq.s32.totalorder %s17, 0
    %p128 = por %p126, %p127
    %s129 = ssub.s32 %s11, %s18
    %p130 = scmp.eq.s32.totalorder %s129, 0
    %s132 = sadd.s32 %s131, 1
    %s133 = scalar_select %p130, %s131, %s132
    %p136 = pneg %p130
    %p137 = scmp.eq.s32.totalorder %s11, 2
    %p138 = por %p136, %p137
    %p139 = scmp.ne.s32.totalorder %s131, %s134
    %p140 = scmp.eq.s32.totalorder %s11, 0
    %p141 = por %p139, %p140
    %p142 = scmp.ne.s32.totalorder %s131, %s134
    %p143 = scmp.eq.s32.totalorder %s16, 2
    %p144 = por %p142, %p143
    %p145 = scmp.ne.s32.totalorder %s134, %s135
    %p146 = scmp.eq.s32.totalorder %s16, 0
    %p147 = por %p145, %p146
    %p148 = scmp.ne.s32.totalorder %s134, %s135
    %p149 = scmp.eq.s32.totalorder %s17, 2
    %p150 = por %p148, %p149
    %p152 = scmp.ne.s32.totalorder %s135, %s151
    %p153 = scmp.eq.s32.totalorder %s17, 0
    %p154 = por %p152, %p153
    %p155 = scmp.le.s32.totalorder 1, %s11
    %p156 = scmp.lt.s32.totalorder %s11, 4
    %p157 = pnand %p155, %p156
    %p158 = pneg %p157
    // Predicated region
    $region9: #{jepa_forward.3} parent=5 // pred_check
      _
    $region10: #{jepa_forward.3} parent=5 // pred_check_branch
      %160 = sbr.rel (%p157) target = $region12
    $region11: #{jepa_forward.3} parent=5 // pred_region
      %s161 = ssub.s32 %s11, 1
      // Predicated region
      $region13: #{jepa_forward.3} parent=11 // pred_check
        %p162 = pneg %p32
      $region14: #{jepa_forward.3} parent=11 // pred_check_branch
        %164 = sbr.rel (%p162) target = $region16
      $region15: #{jepa_forward.3} parent=11 // pred_region
        _
      $region16: #{jepa_forward.3} parent=11 // pred_fallthru
        _
      // Predicated region
      $region17: #{jepa_forward.3} parent=11 // pred_check
        %p165 = pneg %p79
      $region18: #{jepa_forward.3} parent=11 // pred_check_branch
        %167 = sbr.rel (%p165) target = $region20
      $region19: #{jepa_forward.3} parent=11 // pred_region
        _
      $region20: #{jepa_forward.3} parent=11 // pred_fallthru
        _
      // Predicated region
      $region21: #{jepa_forward.3} parent=11 // pred_check
        %p168 = pneg %p100
      $region22: #{jepa_forward.3} parent=11 // pred_check_branch
        %170 = sbr.rel (%p168) target = $region24
      $region23: #{jepa_forward.3} parent=11 // pred_region
        _
      $region24: #{jepa_forward.3} parent=11 // pred_fallthru
        _
      // Predicated region
      $region25: #{jepa_forward.3} parent=11 // pred_check
        %p171 = pneg %p121
      $region26: #{jepa_forward.3} parent=11 // pred_check_branch
        %173 = sbr.rel (%p171) target = $region28
      $region27: #{jepa_forward.3} parent=11 // pred_region
        _
      $region28: #{jepa_forward.3} parent=11 // pred_fallthru
        _
    $region12: #{jepa_forward.3} parent=5 // pred_fallthru
      _
    %p174 = scmp.lt.s32.totalorder %s11, 3
    // Predicated region
    $region29: #{jepa_forward.3} parent=5 // pred_check
      %p175 = pneg %p174
    $region30: #{jepa_forward.3} parent=5 // pred_check_branch
      %177 = sbr.rel (%p175) target = $region32
    $region31: #{jepa_forward.3} parent=5 // pred_region
      // Predicated region
      $region33: #{jepa_forward.3} parent=31 // pred_check
        %p178 = pneg %p52
      $region34: #{jepa_forward.3} parent=31 // pred_check_branch
        %180 = sbr.rel (%p178) target = $region36
      $region35: #{jepa_forward.3} parent=31 // pred_region
        %p181 = scmp.lt.s32.totalorder %s11, 2
        %s182 = scalar_select %p181, %s11, 2
        %s183 = smul.addr %s182, 2
        %s184 = scalar_lea.vmem %s1, %s183
      $region36: #{jepa_forward.3} parent=31 // pred_fallthru
        _
    $region32: #{jepa_forward.3} parent=5 // pred_fallthru
      _
    %p185 = scmp.le.s32.totalorder 1, %s11
    %p186 = scmp.lt.s32.totalorder %s11, 4
    %p187 = pnand %p185, %p186
    %p188 = pneg %p187
    // Predicated region
    $region37: #{jepa_forward.3} parent=5 // pred_check
      _
    $region38: #{jepa_forward.3} parent=5 // pred_check_branch
      %190 = sbr.rel (%p187) target = $region40
    $region39: #{jepa_forward.3} parent=5 // pred_region
      %s191 = ssub.s32 %s11, 1
      %p192 = pneg %p32
      %p193 = pneg %p29
      %p194 = scmp.lt.s32.totalorder %s16, 2
      %s195 = scalar_select %p194, %s16, 2
      %s196 = smul.addr %s195, 2
      %s197 = scalar_lea.vmem %s1, %s196
      %p198 = pneg %p58
      %p199 = pneg %p55
      %p200 = pneg %p79
      %p201 = pneg %p76
      %p202 = pneg %p100
      %p203 = pneg %p97
      %p204 = pneg %p121
      %p205 = pneg %p118
      %p206 = pneg %p147
      %p207 = pneg %p144
      %p208 = scmp.lt.s32.totalorder %s16, 2
      %s209 = scalar_select %p208, %s16, 2
      %s210 = smul.addr %s209, 4
      %s211 = smul.addr %s210, 2
      %s212 = scalar_lea.vmem %s5, %s211
      %p213 = scmp.lt.s32.totalorder %s16, 2
      %s214 = scalar_select %p213, %s16, 2
      %s215 = smul.addr %s214, 2
      %s216 = scalar_lea.vmem %s1, %s215
      %p217 = scmp.lt.s32.totalorder %s16, 2
      %s218 = scalar_select %p217, %s16, 2
      %s219 = smul.addr %s218, 4
      %s220 = smul.addr %s219, 2
      %s221 = scalar_lea.vmem %s5, %s220
      %p222 = scmp.eq.s32.totalorder %s16, 0
      // Predicated region
      $region41: #{jepa_forward.3} parent=39 // pred_check
        %p223 = pneg %p222
      $region42: #{jepa_forward.3} parent=39 // pred_check_branch
        %225 = sbr.rel (%p223) target = $region44
      $region43: #{jepa_forward.3} parent=39 // pred_region
        %v226 = vld [vmem:[%s0] sm:$0xff]
        %227 = vst [vmem:[#allocation2] sm:$0xff] %v226
      $region44: #{jepa_forward.3} parent=39 // pred_fallthru
        _
      %v228 = vld [vmem:[#allocation2] sm:$0xff]
      %v230 = vcombine.high %v228, %v228
      %v232 = vunpack.c.l.s4 1983009808
      %v233 = vunpack.c.0.s8 %v232
      %v234 = vlaneseq
      %v235 = vshrl.u32 %v234, 7
      %v236 = vsub.s32 %v233, %v235
      %v237 = vrot.slane %v228, %v236
      %v239 = vunpack.c.l.s4 1983009808
      %v240 = vunpack.c.0.s8 %v239
      %v241 = vlaneseq
      %v242 = vshrl.u32 %v241, 7
      %v243 = vsub.s32 %v240, %v242
      %v244 = vrot.slane %v230, %v243
      %v245 = vcombine.high %v237, %v237
      %v246 = vcombine.high %v244, %v244
      %v251 = vpack.c.bf16 %v237, %v237
      %v252 = vpack.c.bf16 %v245, %v245
      %v253 = vpack.c.bf16 %v244, %v244
      %v254 = vpack.c.bf16 %v246, %v246
      %v255 = vld [vmem:[%s2] sm:$0xff]
      %v256 = vld [vmem:[%s2 + $0x8] sm:$0xff]
      %v257 = vld [vmem:[%s2 + $0x10] sm:$0xff]
      %v258 = vld [vmem:[%s2 + $0x18] sm:$0xff]
      %v259 = vld [vmem:[%s2 + $0x20] sm:$0xff]
      %v260 = vld [vmem:[%s2 + $0x28] sm:$0xff]
      %v261 = vld [vmem:[%s2 + $0x30] sm:$0xff]
      %v262 = vld [vmem:[%s2 + $0x38] sm:$0xff]
      %v263 = vld [vmem:[%s2 + $0x40] sm:$0xff]
      %v264 = vld [vmem:[%s2 + $0x48] sm:$0xff]
      %v265 = vld [vmem:[%s2 + $0x50] sm:$0xff]
      %v266 = vld [vmem:[%s2 + $0x58] sm:$0xff]
      %v267 = vld [vmem:[%s2 + $0x60] sm:$0xff]
      %v268 = vld [vmem:[%s2 + $0x68] sm:$0xff]
      %v269 = vld [vmem:[%s2 + $0x70] sm:$0xff]
      %v270 = vld [vmem:[%s2 + $0x78] sm:$0xff]
      %v271 = vld [vmem:[%s2 + $0x80] sm:$0xff]
      %v272 = vld [vmem:[%s2 + $0x88] sm:$0xff]
      %v273 = vld [vmem:[%s2 + $0x90] sm:$0xff]
      %v274 = vld [vmem:[%s2 + $0x98] sm:$0xff]
      %v275 = vld [vmem:[%s2 + $0xa0] sm:$0xff]
      %v276 = vld [vmem:[%s2 + $0xa8] sm:$0xff]
      %v277 = vld [vmem:[%s2 + $0xb0] sm:$0xff]
      %v278 = vld [vmem:[%s2 + $0xb8] sm:$0xff]
      %v279 = vld [vmem:[%s2 + $0xc0] sm:$0xff]
      %v280 = vld [vmem:[%s2 + $0xc8] sm:$0xff]
      %v281 = vld [vmem:[%s2 + $0xd0] sm:$0xff]
      %v282 = vld [vmem:[%s2 + $0xd8] sm:$0xff]
      %v283 = vld [vmem:[%s2 + $0xe0] sm:$0xff]
      %v284 = vld [vmem:[%s2 + $0xe8] sm:$0xff]
      %v285 = vld [vmem:[%s2 + $0xf0] sm:$0xff]
      %v286 = vld [vmem:[%s2 + $0xf8] sm:$0xff]
      %v287 = vld [vmem:[%s2 + $0x100] sm:$0xff]
      %v288 = vld [vmem:[%s2 + $0x108] sm:$0xff]
      %v289 = vld [vmem:[%s2 + $0x110] sm:$0xff]
      %v290 = vld [vmem:[%s2 + $0x118] sm:$0xff]
      %v291 = vld [vmem:[%s2 + $0x120] sm:$0xff]
      %v292 = vld [vmem:[%s2 + $0x128] sm:$0xff]
      %v293 = vld [vmem:[%s2 + $0x130] sm:$0xff]
      %v294 = vld [vmem:[%s2 + $0x138] sm:$0xff]
      %v295 = vld [vmem:[%s2 + $0x140] sm:$0xff]
      %v296 = vld [vmem:[%s2 + $0x148] sm:$0xff]
      %v297 = vld [vmem:[%s2 + $0x150] sm:$0xff]
      %v298 = vld [vmem:[%s2 + $0x158] sm:$0xff]
      %v299 = vld [vmem:[%s2 + $0x160] sm:$0xff]
      %v300 = vld [vmem:[%s2 + $0x168] sm:$0xff]
      %v301 = vld [vmem:[%s2 + $0x170] sm:$0xff]
      %v302 = vld [vmem:[%s2 + $0x178] sm:$0xff]
      %v303 = vld [vmem:[%s2 + $0x180] sm:$0xff]
      %v304 = vld [vmem:[%s2 + $0x188] sm:$0xff]
      %v305 = vld [vmem:[%s2 + $0x190] sm:$0xff]
      %v306 = vld [vmem:[%s2 + $0x198] sm:$0xff]
      %v307 = vld [vmem:[%s2 + $0x1a0] sm:$0xff]
      %v308 = vld [vmem:[%s2 + $0x1a8] sm:$0xff]
      %v309 = vld [vmem:[%s2 + $0x1b0] sm:$0xff]
      %v310 = vld [vmem:[%s2 + $0x1b8] sm:$0xff]
      %v311 = vld [vmem:[%s2 + $0x1c0] sm:$0xff]
      %v312 = vld [vmem:[%s2 + $0x1c8] sm:$0xff]
      %v313 = vld [vmem:[%s2 + $0x1d0] sm:$0xff]
      %v314 = vld [vmem:[%s2 + $0x1d8] sm:$0xff]
      %v315 = vld [vmem:[%s2 + $0x1e0] sm:$0xff]
      %v316 = vld [vmem:[%s2 + $0x1e8] sm:$0xff]
      %v317 = vld [vmem:[%s2 + $0x1f0] sm:$0xff]
      %v318 = vld [vmem:[%s2 + $0x1f8] sm:$0xff]
      %v319 = vld [vmem:[%s2 + $0x200] sm:$0xff]
      %v320 = vld [vmem:[%s2 + $0x208] sm:$0xff]
      %v321 = vld [vmem:[%s2 + $0x210] sm:$0xff]
      %v322 = vld [vmem:[%s2 + $0x218] sm:$0xff]
      %v323 = vld [vmem:[%s2 + $0x220] sm:$0xff]
      %v324 = vld [vmem:[%s2 + $0x228] sm:$0xff]
      %v325 = vld [vmem:[%s2 + $0x230] sm:$0xff]
      %v326 = vld [vmem:[%s2 + $0x238] sm:$0xff]
      %v327 = vld [vmem:[%s2 + $0x240] sm:$0xff]
      %v328 = vld [vmem:[%s2 + $0x248] sm:$0xff]
      %v329 = vld [vmem:[%s2 + $0x250] sm:$0xff]
      %v330 = vld [vmem:[%s2 + $0x258] sm:$0xff]
      %v331 = vld [vmem:[%s2 + $0x260] sm:$0xff]
      %v332 = vld [vmem:[%s2 + $0x268] sm:$0xff]
      %v333 = vld [vmem:[%s2 + $0x270] sm:$0xff]
      %v334 = vld [vmem:[%s2 + $0x278] sm:$0xff]
      %v335 = vld [vmem:[%s2 + $0x280] sm:$0xff]
      %v336 = vld [vmem:[%s2 + $0x288] sm:$0xff]
      %v337 = vld [vmem:[%s2 + $0x290] sm:$0xff]
      %v338 = vld [vmem:[%s2 + $0x298] sm:$0xff]
      %v339 = vld [vmem:[%s2 + $0x2a0] sm:$0xff]
      %v340 = vld [vmem:[%s2 + $0x2a8] sm:$0xff]
      %v341 = vld [vmem:[%s2 + $0x2b0] sm:$0xff]
      %v342 = vld [vmem:[%s2 + $0x2b8] sm:$0xff]
      %v343 = vld [vmem:[%s2 + $0x2c0] sm:$0xff]
      %v344 = vld [vmem:[%s2 + $0x2c8] sm:$0xff]
      %v345 = vld [vmem:[%s2 + $0x2d0] sm:$0xff]
      %v346 = vld [vmem:[%s2 + $0x2d8] sm:$0xff]
      %v347 = vld [vmem:[%s2 + $0x2e0] sm:$0xff]
      %v348 = vld [vmem:[%s2 + $0x2e8] sm:$0xff]
      %v349 = vld [vmem:[%s2 + $0x2f0] sm:$0xff]
      %v350 = vld [vmem:[%s2 + $0x2f8] sm:$0xff]
      %v351 = vld [vmem:[%s2 + $0x300] sm:$0xff]
      %v352 = vld [vmem:[%s2 + $0x308] sm:$0xff]
      %v353 = vld [vmem:[%s2 + $0x310] sm:$0xff]
      %v354 = vld [vmem:[%s2 + $0x318] sm:$0xff]
      %v355 = vld [vmem:[%s2 + $0x320] sm:$0xff]
      %v356 = vld [vmem:[%s2 + $0x328] sm:$0xff]
      %v357 = vld [vmem:[%s2 + $0x330] sm:$0xff]
      %v358 = vld [vmem:[%s2 + $0x338] sm:$0xff]
      %v359 = vld [vmem:[%s2 + $0x340] sm:$0xff]
      %v360 = vld [vmem:[%s2 + $0x348] sm:$0xff]
      %v361 = vld [vmem:[%s2 + $0x350] sm:$0xff]
      %v362 = vld [vmem:[%s2 + $0x358] sm:$0xff]
      %v363 = vld [vmem:[%s2 + $0x360] sm:$0xff]
      %v364 = vld [vmem:[%s2 + $0x368] sm:$0xff]
      %v365 = vld [vmem:[%s2 + $0x370] sm:$0xff]
      %v366 = vld [vmem:[%s2 + $0x378] sm:$0xff]
      %v367 = vld [vmem:[%s2 + $0x380] sm:$0xff]
      %v368 = vld [vmem:[%s2 + $0x388] sm:$0xff]
      %v369 = vld [vmem:[%s2 + $0x390] sm:$0xff]
      %v370 = vld [vmem:[%s2 + $0x398] sm:$0xff]
      %v371 = vld [vmem:[%s2 + $0x3a0] sm:$0xff]
      %v372 = vld [vmem:[%s2 + $0x3a8] sm:$0xff]
      %v373 = vld [vmem:[%s2 + $0x3b0] sm:$0xff]
      %v374 = vld [vmem:[%s2 + $0x3b8] sm:$0xff]
      %v375 = vld [vmem:[%s2 + $0x3c0] sm:$0xff]
      %v376 = vld [vmem:[%s2 + $0x3c8] sm:$0xff]
      %v377 = vld [vmem:[%s2 + $0x3d0] sm:$0xff]
      %v378 = vld [vmem:[%s2 + $0x3d8] sm:$0xff]
      %v379 = vld [vmem:[%s2 + $0x3e0] sm:$0xff]
      %v380 = vld [vmem:[%s2 + $0x3e8] sm:$0xff]
      %v381 = vld [vmem:[%s2 + $0x3f0] sm:$0xff]
      %v382 = vld [vmem:[%s2 + $0x3f8] sm:$0xff]
      %v383 = vld [vmem:[%s216] sm:$0x3]
      %v384 = vld [vmem:[%s3] ss:$2 sm:$0xf]
      %386 = vset.pattern.permute.xlu0 0
      %387 = vperm.xlu0 %386, %v383
      %v388 = vpop.permute.xlu0 %387
      %v391 = vlaneseq
      %v392 = vshrl.u32 %v391, 7
      %v393 = vsub.s32 0, %v392
      %v394 = vrot.slane %v384, %v393
      %v395 = vlaneseq
      %v396 = vshrl.u32 %v395, 7
      %v397 = vsub.s32 1, %v396
      %v398 = vrot.slane %v384, %v397
      %v399 = vlaneseq
      %v400 = vshrl.u32 %v399, 7
      %v401 = vsub.s32 2, %v400
      %v402 = vrot.slane %v384, %v401
      %v403 = vlaneseq
      %v404 = vshrl.u32 %v403, 7
      %v405 = vsub.s32 3, %v404
      %v406 = vrot.slane %v384, %v405
      %v411 = vmul.f32 %v388, %v394
      %v412 = vmul.f32 %v388, %v398
      %v413 = vmul.f32 %v388, %v402
      %v414 = vmul.f32 %v388, %v406
      %v543 = vunpack.c.l.b16 %v255
      %v544 = vunpack.c.h.b16 %v255
      %v545 = vunpack.c.l.b16 %v256
      %v546 = vunpack.c.h.b16 %v256
      %v547 = vunpack.c.l.b16 %v257
      %v548 = vunpack.c.h.b16 %v257
      %v549 = vunpack.c.l.b16 %v258
      %v550 = vunpack.c.h.b16 %v258
      %v551 = vunpack.c.l.b16 %v259
      %v552 = vunpack.c.h.b16 %v259
      %v553 = vunpack.c.l.b16 %v260
      %v554 = vunpack.c.h.b16 %v260
      %v555 = vunpack.c.l.b16 %v261
      %v556 = vunpack.c.h.b16 %v261
      %v557 = vunpack.c.l.b16 %v262
      %v558 = vunpack.c.h.b16 %v262
      %v559 = vunpack.c.l.b16 %v263
      %v560 = vunpack.c.h.b16 %v263
      %v561 = vunpack.c.l.b16 %v264
      %v562 = vunpack.c.h.b16 %v264
      %v563 = vunpack.c.l.b16 %v265
      %v564 = vunpack.c.h.b16 %v265
      %v565 = vunpack.c.l.b16 %v266
      %v566 = vunpack.c.h.b16 %v266
      %v567 = vunpack.c.l.b16 %v267
      %v568 = vunpack.c.h.b16 %v267
      %v569 = vunpack.c.l.b16 %v268
      %v570 = vunpack.c.h.b16 %v268
      %v571 = vunpack.c.l.b16 %v269
      %v572 = vunpack.c.h.b16 %v269
      %v573 = vunpack.c.l.b16 %v270
      %v574 = vunpack.c.h.b16 %v270
      %v575 = vunpack.c.l.b16 %v271
      %v576 = vunpack.c.h.b16 %v271
      %v577 = vunpack.c.l.b16 %v272
      %v578 = vunpack.c.h.b16 %v272
      %v579 = vunpack.c.l.b16 %v273
      %v580 = vunpack.c.h.b16 %v273
      %v581 = vunpack.c.l.b16 %v274
      %v582 = vunpack.c.h.b16 %v274
      %v583 = vunpack.c.l.b16 %v275
      %v584 = vunpack.c.h.b16 %v275
      %v585 = vunpack.c.l.b16 %v276
      %v586 = vunpack.c.h.b16 %v276
      %v587 = vunpack.c.l.b16 %v277
      %v588 = vunpack.c.h.b16 %v277
      %v589 = vunpack.c.l.b16 %v278
      %v590 = vunpack.c.h.b16 %v278
      %v591 = vunpack.c.l.b16 %v279
      %v592 = vunpack.c.h.b16 %v279
      %v593 = vunpack.c.l.b16 %v280
      %v594 = vunpack.c.h.b16 %v280
      %v595 = vunpack.c.l.b16 %v281
      %v596 = vunpack.c.h.b16 %v281
      %v597 = vunpack.c.l.b16 %v282
      %v598 = vunpack.c.h.b16 %v282
      %v599 = vunpack.c.l.b16 %v283
      %v600 = vunpack.c.h.b16 %v283
      %v601 = vunpack.c.l.b16 %v284
      %v602 = vunpack.c.h.b16 %v284
      %v603 = vunpack.c.l.b16 %v285
      %v604 = vunpack.c.h.b16 %v285
      %v605 = vunpack.c.l.b16 %v286
      %v606 = vunpack.c.h.b16 %v286
      %v607 = vunpack.c.l.b16 %v287
      %v608 = vunpack.c.h.b16 %v287
      %v609 = vunpack.c.l.b16 %v288
      %v610 = vunpack.c.h.b16 %v288
      %v611 = vunpack.c.l.b16 %v289
      %v612 = vunpack.c.h.b16 %v289
      %v613 = vunpack.c.l.b16 %v290
      %v614 = vunpack.c.h.b16 %v290
      %v615 = vunpack.c.l.b16 %v291
      %v616 = vunpack.c.h.b16 %v291
      %v617 = vunpack.c.l.b16 %v292
      %v618 = vunpack.c.h.b16 %v292
      %v619 = vunpack.c.l.b16 %v293
      %v620 = vunpack.c.h.b16 %v293
      %v621 = vunpack.c.l.b16 %v294
      %v622 = vunpack.c.h.b16 %v294
      %v623 = vunpack.c.l.b16 %v295
      %v624 = vunpack.c.h.b16 %v295
      %v625 = vunpack.c.l.b16 %v296
      %v626 = vunpack.c.h.b16 %v296
      %v627 = vunpack.c.l.b16 %v297
      %v628 = vunpack.c.h.b16 %v297
      %v629 = vunpack.c.l.b16 %v298
      %v630 = vunpack.c.h.b16 %v298
      %v631 = vunpack.c.l.b16 %v299
      %v632 = vunpack.c.h.b16 %v299
      %v633 = vunpack.c.l.b16 %v300
      %v634 = vunpack.c.h.b16 %v300
      %v635 = vunpack.c.l.b16 %v301
      %v636 = vunpack.c.h.b16 %v301
      %v637 = vunpack.c.l.b16 %v302
      %v638 = vunpack.c.h.b16 %v302
      %v639 = vunpack.c.l.b16 %v303
      %v640 = vunpack.c.h.b16 %v303
      %v641 = vunpack.c.l.b16 %v304
      %v642 = vunpack.c.h.b16 %v304
      %v643 = vunpack.c.l.b16 %v305
      %v644 = vunpack.c.h.b16 %v305
      %v645 = vunpack.c.l.b16 %v306
      %v646 = vunpack.c.h.b16 %v306
      %v647 = vunpack.c.l.b16 %v307
      %v648 = vunpack.c.h.b16 %v307
      %v649 = vunpack.c.l.b16 %v308
      %v650 = vunpack.c.h.b16 %v308
      %v651 = vunpack.c.l.b16 %v309
      %v652 = vunpack.c.h.b16 %v309
      %v653 = vunpack.c.l.b16 %v310
      %v654 = vunpack.c.h.b16 %v310
      %v655 = vunpack.c.l.b16 %v311
      %v656 = vunpack.c.h.b16 %v311
      %v657 = vunpack.c.l.b16 %v312
      %v658 = vunpack.c.h.b16 %v312
      %v659 = vunpack.c.l.b16 %v313
      %v660 = vunpack.c.h.b16 %v313
      %v661 = vunpack.c.l.b16 %v314
      %v662 = vunpack.c.h.b16 %v314
      %v663 = vunpack.c.l.b16 %v315
      %v664 = vunpack.c.h.b16 %v315
      %v665 = vunpack.c.l.b16 %v316
      %v666 = vunpack.c.h.b16 %v316
      %v667 = vunpack.c.l.b16 %v317
      %v668 = vunpack.c.h.b16 %v317
      %v669 = vunpack.c.l.b16 %v318
      %v670 = vunpack.c.h.b16 %v318
      %v671 = vunpack.c.l.b16 %v319
      %v672 = vunpack.c.h.b16 %v319
      %v673 = vunpack.c.l.b16 %v320
      %v674 = vunpack.c.h.b16 %v320
      %v675 = vunpack.c.l.b16 %v321
      %v676 = vunpack.c.h.b16 %v321
      %v677 = vunpack.c.l.b16 %v322
      %v678 = vunpack.c.h.b16 %v322
      %v679 = vunpack.c.l.b16 %v323
      %v680 = vunpack.c.h.b16 %v323
      %v681 = vunpack.c.l.b16 %v324
      %v682 = vunpack.c.h.b16 %v324
      %v683 = vunpack.c.l.b16 %v325
      %v684 = vunpack.c.h.b16 %v325
      %v685 = vunpack.c.l.b16 %v326
      %v686 = vunpack.c.h.b16 %v326
      %v687 = vunpack.c.l.b16 %v327
      %v688 = vunpack.c.h.b16 %v327
      %v689 = vunpack.c.l.b16 %v328
      %v690 = vunpack.c.h.b16 %v328
      %v691 = vunpack.c.l.b16 %v329
      %v692 = vunpack.c.h.b16 %v329
      %v693 = vunpack.c.l.b16 %v330
      %v694 = vunpack.c.h.b16 %v330
      %v695 = vunpack.c.l.b16 %v331
      %v696 = vunpack.c.h.b16 %v331
      %v697 = vunpack.c.l.b16 %v332
      %v698 = vunpack.c.h.b16 %v332
      %v699 = vunpack.c.l.b16 %v333
      %v700 = vunpack.c.h.b16 %v333
      %v701 = vunpack.c.l.b16 %v334
      %v702 = vunpack.c.h.b16 %v334
      %v703 = vunpack.c.l.b16 %v335
      %v704 = vunpack.c.h.b16 %v335
      %v705 = vunpack.c.l.b16 %v336
      %v706 = vunpack.c.h.b16 %v336
      %v707 = vunpack.c.l.b16 %v337
      %v708 = vunpack.c.h.b16 %v337
      %v709 = vunpack.c.l.b16 %v338
      %v710 = vunpack.c.h.b16 %v338
      %v711 = vunpack.c.l.b16 %v339
      %v712 = vunpack.c.h.b16 %v339
      %v713 = vunpack.c.l.b16 %v340
      %v714 = vunpack.c.h.b16 %v340
      %v715 = vunpack.c.l.b16 %v341
      %v716 = vunpack.c.h.b16 %v341
      %v717 = vunpack.c.l.b16 %v342
      %v718 = vunpack.c.h.b16 %v342
      %v719 = vunpack.c.l.b16 %v343
      %v720 = vunpack.c.h.b16 %v343
      %v721 = vunpack.c.l.b16 %v344
      %v722 = vunpack.c.h.b16 %v344
      %v723 = vunpack.c.l.b16 %v345
      %v724 = vunpack.c.h.b16 %v345
      %v725 = vunpack.c.l.b16 %v346
      %v726 = vunpack.c.h.b16 %v346
      %v727 = vunpack.c.l.b16 %v347
      %v728 = vunpack.c.h.b16 %v347
      %v729 = vunpack.c.l.b16 %v348
      %v730 = vunpack.c.h.b16 %v348
      %v731 = vunpack.c.l.b16 %v349
      %v732 = vunpack.c.h.b16 %v349
      %v733 = vunpack.c.l.b16 %v350
      %v734 = vunpack.c.h.b16 %v350
      %v735 = vunpack.c.l.b16 %v351
      %v736 = vunpack.c.h.b16 %v351
      %v737 = vunpack.c.l.b16 %v352
      %v738 = vunpack.c.h.b16 %v352
      %v739 = vunpack.c.l.b16 %v353
      %v740 = vunpack.c.h.b16 %v353
      %v741 = vunpack.c.l.b16 %v354
      %v742 = vunpack.c.h.b16 %v354
      %v743 = vunpack.c.l.b16 %v355
      %v744 = vunpack.c.h.b16 %v355
      %v745 = vunpack.c.l.b16 %v356
      %v746 = vunpack.c.h.b16 %v356
      %v747 = vunpack.c.l.b16 %v357
      %v748 = vunpack.c.h.b16 %v357
      %v749 = vunpack.c.l.b16 %v358
      %v750 = vunpack.c.h.b16 %v358
      %v751 = vunpack.c.l.b16 %v359
      %v752 = vunpack.c.h.b16 %v359
      %v753 = vunpack.c.l.b16 %v360
      %v754 = vunpack.c.h.b16 %v360
      %v755 = vunpack.c.l.b16 %v361
      %v756 = vunpack.c.h.b16 %v361
      %v757 = vunpack.c.l.b16 %v362
      %v758 = vunpack.c.h.b16 %v362
      %v759 = vunpack.c.l.b16 %v363
      %v760 = vunpack.c.h.b16 %v363
      %v761 = vunpack.c.l.b16 %v364
      %v762 = vunpack.c.h.b16 %v364
      %v763 = vunpack.c.l.b16 %v365
      %v764 = vunpack.c.h.b16 %v365
      %v765 = vunpack.c.l.b16 %v366
      %v766 = vunpack.c.h.b16 %v366
      %v767 = vunpack.c.l.b16 %v367
      %v768 = vunpack.c.h.b16 %v367
      %v769 = vunpack.c.l.b16 %v368
      %v770 = vunpack.c.h.b16 %v368
      %v771 = vunpack.c.l.b16 %v369
      %v772 = vunpack.c.h.b16 %v369
      %v773 = vunpack.c.l.b16 %v370
      %v774 = vunpack.c.h.b16 %v370
      %v775 = vunpack.c.l.b16 %v371
      %v776 = vunpack.c.h.b16 %v371
      %v777 = vunpack.c.l.b16 %v372
      %v778 = vunpack.c.h.b16 %v372
      %v779 = vunpack.c.l.b16 %v373
      %v780 = vunpack.c.h.b16 %v373
      %v781 = vunpack.c.l.b16 %v374
      %v782 = vunpack.c.h.b16 %v374
      %v783 = vunpack.c.l.b16 %v375
      %v784 = vunpack.c.h.b16 %v375
      %v785 = vunpack.c.l.b16 %v376
      %v786 = vunpack.c.h.b16 %v376
      %v787 = vunpack.c.l.b16 %v377
      %v788 = vunpack.c.h.b16 %v377
      %v789 = vunpack.c.l.b16 %v378
      %v790 = vunpack.c.h.b16 %v378
      %v791 = vunpack.c.l.b16 %v379
      %v792 = vunpack.c.h.b16 %v379
      %v793 = vunpack.c.l.b16 %v380
      %v794 = vunpack.c.h.b16 %v380
      %v795 = vunpack.c.l.b16 %v381
      %v796 = vunpack.c.h.b16 %v381
      %v797 = vunpack.c.l.b16 %v382
      %v798 = vunpack.c.h.b16 %v382
      %v799 = vpack.c.b16 %v547, %v543
      %v800 = vpack.c.b16 %v548, %v544
      %v801 = vpack.c.b16 %v549, %v545
      %v802 = vpack.c.b16 %v550, %v546
      %v803 = vpack.c.b16 %v555, %v551
      %v804 = vpack.c.b16 %v556, %v552
      %v805 = vpack.c.b16 %v557, %v553
      %v806 = vpack.c.b16 %v558, %v554
      %v807 = vpack.c.b16 %v563, %v559
      %v808 = vpack.c.b16 %v564, %v560
      %v809 = vpack.c.b16 %v565, %v561
      %v810 = vpack.c.b16 %v566, %v562
      %v811 = vpack.c.b16 %v571, %v567
      %v812 = vpack.c.b16 %v572, %v568
      %v813 = vpack.c.b16 %v573, %v569
      %v814 = vpack.c.b16 %v574, %v570
      %v815 = vpack.c.b16 %v579, %v575
      %v816 = vpack.c.b16 %v580, %v576
      %v817 = vpack.c.b16 %v581, %v577
      %v818 = vpack.c.b16 %v582, %v578
      %v819 = vpack.c.b16 %v587, %v583
      %v820 = vpack.c.b16 %v588, %v584
      %v821 = vpack.c.b16 %v589, %v585
      %v822 = vpack.c.b16 %v590, %v586
      %v823 = vpack.c.b16 %v595, %v591
      %v824 = vpack.c.b16 %v596, %v592
      %v825 = vpack.c.b16 %v597, %v593
      %v826 = vpack.c.b16 %v598, %v594
      %v827 = vpack.c.b16 %v603, %v599
      %v828 = vpack.c.b16 %v604, %v600
      %v829 = vpack.c.b16 %v605, %v601
      %v830 = vpack.c.b16 %v606, %v602
      %v831 = vpack.c.b16 %v611, %v607
      %v832 = vpack.c.b16 %v612, %v608
      %v833 = vpack.c.b16 %v613, %v609
      %v834 = vpack.c.b16 %v614, %v610
      %v835 = vpack.c.b16 %v619, %v615
      %v836 = vpack.c.b16 %v620, %v616
      %v837 = vpack.c.b16 %v621, %v617
      %v838 = vpack.c.b16 %v622, %v618
      %v839 = vpack.c.b16 %v627, %v623
      %v840 = vpack.c.b16 %v628, %v624
      %v841 = vpack.c.b16 %v629, %v625
      %v842 = vpack.c.b16 %v630, %v626
      %v843 = vpack.c.b16 %v635, %v631
      %v844 = vpack.c.b16 %v636, %v632
      %v845 = vpack.c.b16 %v637, %v633
      %v846 = vpack.c.b16 %v638, %v634
      %v847 = vpack.c.b16 %v643, %v639
      %v848 = vpack.c.b16 %v644, %v640
      %v849 = vpack.c.b16 %v645, %v641
      %v850 = vpack.c.b16 %v646, %v642
      %v851 = vpack.c.b16 %v651, %v647
      %v852 = vpack.c.b16 %v652, %v648
      %v853 = vpack.c.b16 %v653, %v649
      %v854 = vpack.c.b16 %v654, %v650
      %v855 = vpack.c.b16 %v659, %v655
      %v856 = vpack.c.b16 %v660, %v656
      %v857 = vpack.c.b16 %v661, %v657
      %v858 = vpack.c.b16 %v662, %v658
      %v859 = vpack.c.b16 %v667, %v663
      %v860 = vpack.c.b16 %v668, %v664
      %v861 = vpack.c.b16 %v669, %v665
      %v862 = vpack.c.b16 %v670, %v666
      %v863 = vpack.c.b16 %v675, %v671
      %v864 = vpack.c.b16 %v676, %v672
      %v865 = vpack.c.b16 %v677, %v673
      %v866 = vpack.c.b16 %v678, %v674
      %v867 = vpack.c.b16 %v683, %v679
      %v868 = vpack.c.b16 %v684, %v680
      %v869 = vpack.c.b16 %v685, %v681
      %v870 = vpack.c.b16 %v686, %v682
      %v871 = vpack.c.b16 %v691, %v687
      %v872 = vpack.c.b16 %v692, %v688
      %v873 = vpack.c.b16 %v693, %v689
      %v874 = vpack.c.b16 %v694, %v690
      %v875 = vpack.c.b16 %v699, %v695
      %v876 = vpack.c.b16 %v700, %v696
      %v877 = vpack.c.b16 %v701, %v697
      %v878 = vpack.c.b16 %v702, %v698
      %v879 = vpack.c.b16 %v707, %v703
      %v880 = vpack.c.b16 %v708, %v704
      %v881 = vpack.c.b16 %v709, %v705
      %v882 = vpack.c.b16 %v710, %v706
      %v883 = vpack.c.b16 %v715, %v711
      %v884 = vpack.c.b16 %v716, %v712
      %v885 = vpack.c.b16 %v717, %v713
      %v886 = vpack.c.b16 %v718, %v714
      %v887 = vpack.c.b16 %v723, %v719
      %v888 = vpack.c.b16 %v724, %v720
      %v889 = vpack.c.b16 %v725, %v721
      %v890 = vpack.c.b16 %v726, %v722
      %v891 = vpack.c.b16 %v731, %v727
      %v892 = vpack.c.b16 %v732, %v728
      %v893 = vpack.c.b16 %v733, %v729
      %v894 = vpack.c.b16 %v734, %v730
      %v895 = vpack.c.b16 %v739, %v735
      %v896 = vpack.c.b16 %v740, %v736
      %v897 = vpack.c.b16 %v741, %v737
      %v898 = vpack.c.b16 %v742, %v738
      %v899 = vpack.c.b16 %v747, %v743
      %v900 = vpack.c.b16 %v748, %v744
      %v901 = vpack.c.b16 %v749, %v745
      %v902 = vpack.c.b16 %v750, %v746
      %v903 = vpack.c.b16 %v755, %v751
      %v904 = vpack.c.b16 %v756, %v752
      %v905 = vpack.c.b16 %v757, %v753
      %v906 = vpack.c.b16 %v758, %v754
      %v907 = vpack.c.b16 %v763, %v759
      %v908 = vpack.c.b16 %v764, %v760
      %v909 = vpack.c.b16 %v765, %v761
      %v910 = vpack.c.b16 %v766, %v762
      %v911 = vpack.c.b16 %v771, %v767
      %v912 = vpack.c.b16 %v772, %v768
      %v913 = vpack.c.b16 %v773, %v769
      %v914 = vpack.c.b16 %v774, %v770
      %v915 = vpack.c.b16 %v779, %v775
      %v916 = vpack.c.b16 %v780, %v776
      %v917 = vpack.c.b16 %v781, %v777
      %v918 = vpack.c.b16 %v782, %v778
      %v919 = vpack.c.b16 %v787, %v783
      %v920 = vpack.c.b16 %v788, %v784
      %v921 = vpack.c.b16 %v789, %v785
      %v922 = vpack.c.b16 %v790, %v786
      %v923 = vpack.c.b16 %v795, %v791
      %v924 = vpack.c.b16 %v796, %v792
      %v925 = vpack.c.b16 %v797, %v793
      %v926 = vpack.c.b16 %v798, %v794
      %1055 = vmatprep.subr.bf16.mxu0 %v828
      %1056 = vmatpush1.bf16.msra.mxu0 %v827
      %1057 = vmatprep.subr.bf16.mxu0 %v824
      %1058 = vmatpush1.bf16.msra.mxu0 %v823
      %1059 = vmatprep.subr.bf16.mxu0 %v820
      %1060 = vmatpush1.bf16.msra.mxu0 %v819
      %1061 = vmatprep.subr.bf16.mxu0 %v816
      %1062 = vmatpush1.bf16.msra.mxu0 %v815
      %1063 = vmatprep.subr.bf16.mxu0 %v812
      %1064 = vmatpush1.bf16.msra.mxu0 %v811
      %1065 = vmatprep.subr.bf16.mxu0 %v808
      %1066 = vmatpush1.bf16.msra.mxu0 %v807
      %1067 = vmatprep.subr.bf16.mxu0 %v804
      %1068 = vmatpush1.bf16.msra.mxu0 %v803
      %1069 = vmatprep.subr.bf16.mxu0 %v800
      %1070 = vmatpush1.bf16.msra.mxu0 %v799
      %1071 = vmatprep.subr.bf16.mxu0 %v860
      %1072 = vmatpush2.bf16.msra.mxu0 %v859
      %1073 = vmatprep.subr.bf16.mxu0 %v856
      %1074 = vmatpush2.bf16.msra.mxu0 %v855
      %1075 = vmatprep.subr.bf16.mxu0 %v852
      %1076 = vmatpush2.bf16.msra.mxu0 %v851
      %1077 = vmatprep.subr.bf16.mxu0 %v848
      %1078 = vmatpush2.bf16.msra.mxu0 %v847
      %1079 = vmatprep.subr.bf16.mxu0 %v844
      %1080 = vmatpush2.bf16.msra.mxu0 %v843
      %1081 = vmatprep.subr.bf16.mxu0 %v840
      %1082 = vmatpush2.bf16.msra.mxu0 %v839
      %1083 = vmatprep.subr.bf16.mxu0 %v836
      %1084 = vmatpush2.bf16.msra.mxu0 %v835
      %1085 = vmatprep.subr.bf16.mxu0 %v832
      %1086 = vmatpush2.bf16.msra.mxu0 %v831
      %1087 = vmatprep.mubr.bf16.mxu0 %v252
      %1088 = vmatmul.mubr.bf16.gmra.mxu0 %v251
      %v1089 = vpop.f32.mrf.mxu0
      %v1090 = vadd.f32 %v411, %v1089
      %v1091 = vpop.f32.mrf.mxu0
      %v1092 = vadd.f32 %v412, %v1091
      %v1093 = vpop.f32.mrf.mxu0
      %v1094 = vpop.f32.mrf.mxu0
      %1095 = vdwg.mxu0
      %1096 = vmatprep.subr.bf16.mxu0 %v892
      %1097 = vmatpush1.bf16.msra.mxu0 %v891
      %1098 = vmatprep.subr.bf16.mxu0 %v888
      %1099 = vmatpush1.bf16.msra.mxu0 %v887
      %1100 = vmatprep.subr.bf16.mxu0 %v884
      %1101 = vmatpush1.bf16.msra.mxu0 %v883
      %1102 = vmatprep.subr.bf16.mxu0 %v880
      %1103 = vmatpush1.bf16.msra.mxu0 %v879
      %1104 = vmatprep.subr.bf16.mxu0 %v876
      %1105 = vmatpush1.bf16.msra.mxu0 %v875
      %1106 = vmatprep.subr.bf16.mxu0 %v872
      %1107 = vmatpush1.bf16.msra.mxu0 %v871
      %1108 = vmatprep.subr.bf16.mxu0 %v868
      %1109 = vmatpush1.bf16.msra.mxu0 %v867
      %1110 = vmatprep.subr.bf16.mxu0 %v864
      %1111 = vmatpush1.bf16.msra.mxu0 %v863
      %1112 = vmatprep.subr.bf16.mxu0 %v924
      %1113 = vmatpush2.bf16.msra.mxu0 %v923
      %1114 = vmatprep.subr.bf16.mxu0 %v920
      %1115 = vmatpush2.bf16.msra.mxu0 %v919
      %1116 = vmatprep.subr.bf16.mxu0 %v916
      %1117 = vmatpush2.bf16.msra.mxu0 %v915
      %1118 = vmatprep.subr.bf16.mxu0 %v912
      %1119 = vmatpush2.bf16.msra.mxu0 %v911
      %1120 = vmatprep.subr.bf16.mxu0 %v908
      %1121 = vmatpush2.bf16.msra.mxu0 %v907
      %1122 = vmatprep.subr.bf16.mxu0 %v904
      %1123 = vmatpush2.bf16.msra.mxu0 %v903
      %1124 = vmatprep.subr.bf16.mxu0 %v900
      %1125 = vmatpush2.bf16.msra.mxu0 %v899
      %1126 = vmatprep.subr.bf16.mxu0 %v896
      %1127 = vmatpush2.bf16.msra.mxu0 %v895
      %1128 = vmatprep.mubr.bf16.mxu0 %v254
      %1129 = vmatmul.mubr.bf16.gmra.mxu0 %v253
      %v1130 = vpop.f32.mrf.mxu0
      %v1131 = vadd.f32 %v1090, %v1130
      %v1132 = vpop.f32.mrf.mxu0
      %v1133 = vadd.f32 %v1092, %v1132
      %v1134 = vpop.f32.mrf.mxu0
      %v1135 = vpop.f32.mrf.mxu0
      %1136 = vdwg.mxu0
      %1137 = vmatprep.subr.bf16.mxu0 %v830
      %1138 = vmatpush1.bf16.msra.mxu0 %v829
      %1139 = vmatprep.subr.bf16.mxu0 %v826
      %1140 = vmatpush1.bf16.msra.mxu0 %v825
      %1141 = vmatprep.subr.bf16.mxu0 %v822
      %1142 = vmatpush1.bf16.msra.mxu0 %v821
      %1143 = vmatprep.subr.bf16.mxu0 %v818
      %1144 = vmatpush1.bf16.msra.mxu0 %v817
      %1145 = vmatprep.subr.bf16.mxu0 %v814
      %1146 = vmatpush1.bf16.msra.mxu0 %v813
      %1147 = vmatprep.subr.bf16.mxu0 %v810
      %1148 = vmatpush1.bf16.msra.mxu0 %v809
      %1149 = vmatprep.subr.bf16.mxu0 %v806
      %1150 = vmatpush1.bf16.msra.mxu0 %v805
      %1151 = vmatprep.subr.bf16.mxu0 %v802
      %1152 = vmatpush1.bf16.msra.mxu0 %v801
      %1153 = vmatprep.subr.bf16.mxu0 %v862
      %1154 = vmatpush2.bf16.msra.mxu0 %v861
      %1155 = vmatprep.subr.bf16.mxu0 %v858
      %1156 = vmatpush2.bf16.msra.mxu0 %v857
      %1157 = vmatprep.subr.bf16.mxu0 %v854
      %1158 = vmatpush2.bf16.msra.mxu0 %v853
      %1159 = vmatprep.subr.bf16.mxu0 %v850
      %1160 = vmatpush2.bf16.msra.mxu0 %v849
      %1161 = vmatprep.subr.bf16.mxu0 %v846
      %1162 = vmatpush2.bf16.msra.mxu0 %v845
      %1163 = vmatprep.subr.bf16.mxu0 %v842
      %1164 = vmatpush2.bf16.msra.mxu0 %v841
      %1165 = vmatprep.subr.bf16.mxu0 %v838
      %1166 = vmatpush2.bf16.msra.mxu0 %v837
      %1167 = vmatprep.subr.bf16.mxu0 %v834
      %1168 = vmatpush2.bf16.msra.mxu0 %v833
      %1169 = vmatprep.mubr.bf16.mxu0 %v252
      %1170 = vmatmul.mubr.bf16.gmra.mxu0 %v251
      %v1171 = vpop.f32.mrf.mxu0
      %v1172 = vadd.f32 %v413, %v1171
      %v1173 = vpop.f32.mrf.mxu0
      %v1174 = vadd.f32 %v414, %v1173
      %v1175 = vpop.f32.mrf.mxu0
      %v1176 = vpop.f32.mrf.mxu0
      %1177 = vdwg.mxu0
      %1178 = vmatprep.subr.bf16.mxu0 %v894
      %1179 = vmatpush1.bf16.msra.mxu0 %v893
      %1180 = vmatprep.subr.bf16.mxu0 %v890
      %1181 = vmatpush1.bf16.msra.mxu0 %v889
      %1182 = vmatprep.subr.bf16.mxu0 %v886
      %1183 = vmatpush1.bf16.msra.mxu0 %v885
      %1184 = vmatprep.subr.bf16.mxu0 %v882
      %1185 = vmatpush1.bf16.msra.mxu0 %v881
      %1186 = vmatprep.subr.bf16.mxu0 %v878
      %1187 = vmatpush1.bf16.msra.mxu0 %v877
      %1188 = vmatprep.subr.bf16.mxu0 %v874
      %1189 = vmatpush1.bf16.msra.mxu0 %v873
      %1190 = vmatprep.subr.bf16.mxu0 %v870
      %1191 = vmatpush1.bf16.msra.mxu0 %v869
      %1192 = vmatprep.subr.bf16.mxu0 %v866
      %1193 = vmatpush1.bf16.msra.mxu0 %v865
      %1194 = vmatprep.subr.bf16.mxu0 %v926
      %1195 = vmatpush2.bf16.msra.mxu0 %v925
      %1196 = vmatprep.subr.bf16.mxu0 %v922
      %1197 = vmatpush2.bf16.msra.mxu0 %v921
      %1198 = vmatprep.subr.bf16.mxu0 %v918
      %1199 = vmatpush2.bf16.msra.mxu0 %v917
      %1200 = vmatprep.subr.bf16.mxu0 %v914
      %1201 = vmatpush2.bf16.msra.mxu0 %v913
      %1202 = vmatprep.subr.bf16.mxu0 %v910
      %1203 = vmatpush2.bf16.msra.mxu0 %v909
      %1204 = vmatprep.subr.bf16.mxu0 %v906
      %1205 = vmatpush2.bf16.msra.mxu0 %v905
      %1206 = vmatprep.subr.bf16.mxu0 %v902
      %1207 = vmatpush2.bf16.msra.mxu0 %v901
      %1208 = vmatprep.subr.bf16.mxu0 %v898
      %1209 = vmatpush2.bf16.msra.mxu0 %v897
      %1210 = vmatprep.mubr.bf16.mxu0 %v254
      %1211 = vmatmul.mubr.bf16.gmra.mxu0 %v253
      %v1212 = vpop.f32.mrf.mxu0
      %v1213 = vadd.f32 %v1172, %v1212
      %v1214 = vpop.f32.mrf.mxu0
      %v1215 = vadd.f32 %v1174, %v1214
      %v1216 = vpop.f32.mrf.mxu0
      %v1217 = vpop.f32.mrf.mxu0
      %1218 = vdwg.mxu0
      %s1219 = scalar_lea.vmem %s3, 1
      %v1220 = vld [vmem:[%s1219] ss:$2 sm:$0xf]
      %1221 = vset.pattern.permute.xlu0 1
      %1222 = vperm.xlu0 %1221, %v383
      %v1223 = vpop.permute.xlu0 %1222
      %v1226 = vlaneseq
      %v1227 = vshrl.u32 %v1226, 7
      %v1228 = vsub.s32 0, %v1227
      %v1229 = vrot.slane %v1220, %v1228
      %v1230 = vlaneseq
      %v1231 = vshrl.u32 %v1230, 7
      %v1232 = vsub.s32 1, %v1231
      %v1233 = vrot.slane %v1220, %v1232
      %v1234 = vlaneseq
      %v1235 = vshrl.u32 %v1234, 7
      %v1236 = vsub.s32 2, %v1235
      %v1237 = vrot.slane %v1220, %v1236
      %v1238 = vlaneseq
      %v1239 = vshrl.u32 %v1238, 7
      %v1240 = vsub.s32 3, %v1239
      %v1241 = vrot.slane %v1220, %v1240
      %v1246 = vmul.f32 %v1223, %v1229
      %v1247 = vmul.f32 %v1223, %v1233
      %v1248 = vmul.f32 %v1223, %v1237
      %v1249 = vmul.f32 %v1223, %v1241
      %v1250 = vadd.f32 %v1131, %v1246
      %v1251 = vadd.f32 %v1133, %v1247
      %v1252 = vadd.f32 %v1213, %v1248
      %v1253 = vadd.f32 %v1215, %v1249
      %v1254 = vld [vmem:[%s4] sm:$0xf]
      %v1256 = vlaneseq
      %v1257 = vshrl.u32 %v1256, 7
      %v1258 = vsub.s32 0, %v1257
      %v1259 = vrot.slane %v1254, %v1258
      %v1260 = vlaneseq
      %v1261 = vshrl.u32 %v1260, 7
      %v1262 = vsub.s32 1, %v1261
      %v1263 = vrot.slane %v1254, %v1262
      %v1264 = vlaneseq
      %v1265 = vshrl.u32 %v1264, 7
      %v1266 = vsub.s32 2, %v1265
      %v1267 = vrot.slane %v1254, %v1266
      %v1268 = vlaneseq
      %v1269 = vshrl.u32 %v1268, 7
      %v1270 = vsub.s32 3, %v1269
      %v1271 = vrot.slane %v1254, %v1270
      %v1276 = vadd.f32 %v1250, %v1259
      %v1277 = vadd.f32 %v1251, %v1263
      %v1278 = vadd.f32 %v1252, %v1267
      %v1279 = vadd.f32 %v1253, %v1271
      %v1280 = vmax.f32 %v1276, 0.0
      %v1281 = vmax.f32 %v1277, 0.0
      %v1282 = vmax.f32 %v1278, 0.0
      %v1283 = vmax.f32 %v1279, 0.0
      %v1288 = vcombine.low %v1280, %v1281
      %v1289 = vcombine.low %v1282, %v1283
      %v1291 = vunpack.c.l.s4 1983009808
      %v1292 = vunpack.c.0.s8 %v1291
      %v1293 = vlaneseq
      %v1294 = vshrl.u32 %v1293, 7
      %v1295 = vsub.s32 %v1292, %v1294
      %v1296 = vrot.slane %v1288, %v1295
      %v1298 = vunpack.c.l.s4 1983009808
      %v1299 = vunpack.c.0.s8 %v1298
      %v1300 = vlaneseq
      %v1301 = vshrl.u32 %v1300, 7
      %v1302 = vsub.s32 %v1299, %v1301
      %v1303 = vrot.slane %v1289, %v1302
      %v1304 = vcombine.low %v1296, %v1303
      %1306 = vst [vmem:[#allocation2] sm:$0xff] %v1304
      %1307 = vst [vmem:[%s221] sm:$0xff] %v1304
      %p1308 = scmp.lt.s32.totalorder %s16, 2
      %s1309 = scalar_select %p1308, %s16, 2
      %s1310 = smul.addr %s1309, 4
      %s1311 = smul.addr %s1310, 2
      %s1312 = scalar_lea.vmem %s5, %s1311
      // Predicated region
      $region45: #{jepa_forward.3} parent=39 // pred_check
        %p1313 = pneg %p144
      $region46: #{jepa_forward.3} parent=39 // pred_check_branch
        %1315 = sbr.rel (%p1313) target = $region48
      $region47: #{jepa_forward.3} parent=39 // pred_region
        _
      $region48: #{jepa_forward.3} parent=39 // pred_fallthru
        _
    $region40: #{jepa_forward.3} parent=5 // pred_fallthru
      _
    %p1316 = scmp.le.s32.totalorder 2, %s11
    // Predicated region
    $region49: #{jepa_forward.3} parent=5 // pred_check
      %p1317 = pneg %p1316
    $region50: #{jepa_forward.3} parent=5 // pred_check_branch
      %1319 = sbr.rel (%p1317) target = $region52
    $region51: #{jepa_forward.3} parent=5 // pred_region
      %s1320 = ssub.s32 %s11, 2
      // Predicated region
      $region53: #{jepa_forward.3} parent=51 // pred_check
        %p1321 = pneg %p150
      $region54: #{jepa_forward.3} parent=51 // pred_check_branch
        %1323 = sbr.rel (%p1321) target = $region56
      $region55: #{jepa_forward.3} parent=51 // pred_region
        %p1324 = scmp.lt.s32.totalorder %s17, 2
        %s1325 = scalar_select %p1324, %s17, 2
        %s1326 = smul.addr %s1325, 4
        %s1327 = smul.addr %s1326, 2
        %s1328 = scalar_lea.vmem %s5, %s1327
      $region56: #{jepa_forward.3} parent=51 // pred_fallthru
        _
    $region52: #{jepa_forward.3} parent=5 // pred_fallthru
      _
  $region6: #{jepa_forward.3} parent=0 // loop_footer
    %s15 = sadd.s32 1, %s11
  $region7: #{jepa_forward.3} parent=0 // loop_footer_branch
    %10 = sbr.rel target = $region3
  $region8: #{jepa_forward.3} parent=0 // loop_exit
    _

</llo_original>
